<compile_context>
chip_gen: v5e
topology: v5e:2x2
jax: 0.10.0
libtpu: 0.0.40
codegen_flags: <defaults>
</compile_context>

<pallas_src>
import math

import jax
import jax.numpy as jnp
from jax.experimental import pallas as pl
from jax.experimental.pallas import tpu as pltpu

# ------------------------- problem sizes (small demo) -------------------------
BATCH = 2
SEQ = 8
HIDDEN = 32
HEADS = 4
DK = HIDDEN // HEADS
LN_EPS = 1e-6


# ------------------------- shared math (kernel + reference) -------------------
# These helpers are used both inside the Pallas kernel (params passed as Refs,
# indexed per use) and in the pure-JAX reference (params passed as arrays), so
# the two paths compute identical math.
def _gelu(x):
    # Recoder GELU (tanh approximation, BERT style), f32.  Cube as explicit
    # multiplies so it stays on VALU multiplies.
    return 0.5 * x * (1.0 + jnp.tanh(math.sqrt(2.0 / math.pi)
                                     * (x + 0.044715 * x * x * x)))


def _layernorm(x, gamma, beta):
    # Recoder LayerNorm: a2 * (x - mean) / (std + eps) + b2, torch.std (unbiased).
    # Exact divide: the EUP approximate reciprocal previously used here sits on
    # the residual path and compounded past the numerical tolerance.
    mean = jnp.mean(x, axis=-1, keepdims=True)
    var = jnp.sum((x - mean) ** 2, axis=-1, keepdims=True) / (x.shape[-1] - 1)
    return gamma * (x - mean) / (jnp.sqrt(var) + LN_EPS) + beta


def _linear(x, w_bf16, b_f32):
    # bf16 MXU operands, f32 accumulation, f32 bias add.
    y = jnp.dot(x.astype(jnp.bfloat16), w_bf16, preferred_element_type=jnp.float32)
    return y + b_f32


def _mha(x, mask_nn, w_qkv, b_qkv, w_out, b_out, hmask):
    # Multi-head self-attention on stacked tokens.
    # x: (N, H) f32.  mask_nn: (N, N) block-diagonal across folded batches, 1 = attend.
    # hmask: (HEADS, H) 0/1 head-membership mask.  The 1/sqrt(DK) scale is folded
    # into the packed Q weights host-side.
    n = x.shape[0]
    qkv = _linear(x, w_qkv, b_qkv)                       # (N, 3H) f32, fused projections
    q = qkv[:, :HIDDEN]
    k = qkv[:, HIDDEN:2 * HIDDEN].astype(jnp.bfloat16)
    v = qkv[:, 2 * HIDDEN:].astype(jnp.bfloat16)

    # Head split with NO transposes / per-head lane slices: zero Q outside each
    # head's dims and stack heads along rows (leading-dim reshape only).
    qh = (q[None, :, :] * hmask[:, None, :]).reshape(HEADS * n, HIDDEN)
    sc = jnp.einsum('qd,kd->qk', qh.astype(jnp.bfloat16), k,
                    preferred_element_type=jnp.float32)  # (HEADS*N, N), MXU trans_b
    sc = sc.reshape(HEADS, n, n)
    sc = jnp.where(mask_nn[None, :, :] > 0, sc, -1e9)
    m = jnp.max(sc, axis=-1, keepdims=True)
    e = jnp.exp(sc - m)
    p = e / jnp.sum(e, axis=-1, keepdims=True)

    # Per-head context against full-H V (4x tiny redundant MXU flops traded for
    # zero relayouts), then head re-merge as a masked sum over the leading axis.
    ctx = jnp.dot(p.reshape(HEADS * n, n).astype(jnp.bfloat16), v,
                  preferred_element_type=jnp.float32)    # (HEADS*N, H)
    merged = jnp.sum(ctx.reshape(HEADS, n, HIDDEN) * hmask[:, None, :], axis=0)  # (N, H)
    return _linear(merged, w_out, b_out)


def _combination(x, other, w_qk, b_qk, w_v, b_v, w_out, b_out, he, het):
    # MultiHeadedCombination (TreeGen/Recoder): query=key=x, value=other;
    # per-head 2-way softmax gate between key and value.  The 1/sqrt(DK) gate
    # scale is folded into the packed Q weights host-side.
    n = x.shape[0]
    qk = _linear(x, w_qk, b_qk)                   # (N, 2H) fused q|k
    q = qk[:, :HIDDEN]
    k = qk[:, HIDDEN:]
    v = _linear(other, w_v, b_v)                  # (N, H)
    # Per-head dot products: both gates stacked into ONE bf16 MXU matmul against
    # the 0/1 (H, HEADS) head-sum matrix (exact in bf16).
    gi = jnp.concatenate([q * k, q * v], axis=0).astype(jnp.bfloat16)   # (2N, H)
    w12 = jnp.dot(gi, he, preferred_element_type=jnp.float32)           # (2N, HEADS)
    w1 = w12[:n]
    w2 = w12[n:]
    m = jnp.maximum(w1, w2)
    e1 = jnp.exp(w1 - m)
    e2 = jnp.exp(w2 - m)
    inv = 1.0 / (e1 + e2)
    g = jnp.concatenate([e1 * inv, e2 * inv], axis=0).astype(jnp.bfloat16)  # (2N, HEADS)
    g12 = jnp.dot(g, het, preferred_element_type=jnp.float32)              # (2N, H)
    o = g12[:n] * k + g12[n:] * v
    return _linear(o, w_out, b_out)


def _gcnn(x, p_nn, w1, b1, w2, b2):
    # TODO(synk): GCNN internals reconstructed as a 2-layer graph conv
    # (P @ x -> Linear -> GELU -> P @ h -> Linear); exact Recoder source not provided.
    xb = x.astype(jnp.bfloat16)
    s0 = jnp.dot(p_nn, xb, preferred_element_type=jnp.float32)
    s1 = _gelu(_linear(s0, w1, b1))
    s2 = jnp.dot(p_nn, s1.astype(jnp.bfloat16), preferred_element_type=jnp.float32)
    return _linear(s2, w2, b2)


def _block_forward(x, mask_nn, pos, charem, p_nn,
                   w_qkv, b_qkv, w_qk_c, b_qk_c, w_hh, b_hh,
                   ln_g, ln_b, he, het, hmask):
    # Dropout layers are identity (eval mode).  Param containers may be Pallas
    # Refs (kernel) or jnp arrays (reference); they are indexed per use site so
    # the kernel never materializes the whole weight stacks.
    x = x + _mha(_layernorm(x, ln_g[0], ln_b[0]), mask_nn,
                 w_qkv[...], b_qkv[...], w_hh[0], b_hh[0], hmask[...])
    x = x + _combination(_layernorm(x, ln_g[1], ln_b[1]), pos,
                         w_qk_c[0], b_qk_c[0], w_hh[1], b_hh[1],
                         w_hh[2], b_hh[2], he[...], het[...])
    x = x + _combination(_layernorm(x, ln_g[2], ln_b[2]), charem,
                         w_qk_c[1], b_qk_c[1], w_hh[3], b_hh[3],
                         w_hh[4], b_hh[4], he[...], het[...])
    x = x + _gcnn(_layernorm(x, ln_g[3], ln_b[3]), p_nn,
                  w_hh[5], b_hh[5], w_hh[6], b_hh[6])
    return x


# ------------------------------ Pallas kernel ---------------------------------
def _block_kernel(x_ref, mask_ref, pos_ref, char_ref, p_ref,
                  w_qkv_ref, b_qkv_ref, w_qk_ref, b_qk_ref, w_hh_ref, b_hh_ref,
                  ln_g_ref, ln_b_ref, he_ref, het_ref, hmask_ref, o_ref):
    o_ref[0] = _block_forward(
        x_ref[0], mask_ref[0], pos_ref[0], char_ref[0], p_ref[0],
        w_qkv_ref, b_qkv_ref, w_qk_ref, b_qk_ref, w_hh_ref, b_hh_ref,
        ln_g_ref, ln_b_ref, he_ref, het_ref, hmask_ref)


# ------------------------------ wrapper helpers --------------------------------
def _num_grid_blocks(batch, seq, hidden):
    """Batch-group (grid-step) policy.

    - Fold batches into one stacked (N, H) block to amortize the ~0.35us/step
      cost and enlarge matmul M, BUT
    - cap per-step resident bytes (activations + O(N^2) block-diagonal
      mask/adjacency) at a few MiB so large batches keep >=2 grid steps for
      DMA/compute overlap and stay inside scoped-VMEM defaults
      (16 MiB v5e / 32 MiB v6e & v7x, 64 MiB physical on v7x), AND
    - only take the 2-way "parallel" split across v7x's two TensorCores when
      each core still gets >=128 stacked rows of work.
    """
    try:
        kind = jax.devices()[0].device_kind.lower()
    except Exception:  # pragma: no cover - defensive
        kind = ""
    n_tc = 2 if "v7" in kind else 1

    def step_bytes(g):
        rows = (batch // g) * seq
        # x/pos/charem + out (f32) + mask (f32) + adjacency (bf16).
        return 4 * rows * hidden * 4 + rows * rows * (4 + 2)

    divisors = [g for g in range(1, batch + 1) if batch % g == 0]
    budget = 4 << 20
    nblk = next((g for g in divisors if step_bytes(g) <= budget), batch)
    if n_tc > 1:
        cand = next((g for g in divisors if g >= nblk and g % n_tc == 0), None)
        if cand is not None and (batch // cand) * seq >= 128:
            nblk = cand
    return nblk


def _block_diag(blocks):
    # (nblk, bb, S, S) per-batch matrices -> (nblk, bb*S, bb*S) block-diagonal
    # (exact: off-diagonal blocks are zero -> masked attention / zero adjacency).
    nblk, bb, s, _ = blocks.shape
    eye = jnp.eye(bb, dtype=blocks.dtype)
    full = jnp.einsum('gbij,bc->gbicj', blocks, eye)
    return full.reshape(nblk, bb * s, bb * s)


def _fold_inputs(x, mask, pos, charem, inputP, nblk):
    b, s, h = x.shape
    bb = b // nblk
    n = bb * s
    return (x.reshape(nblk, n, h),
            _block_diag(mask.reshape(nblk, bb, s, s)),
            pos.reshape(nblk, n, h),
            charem.reshape(nblk, n, h),
            _block_diag(inputP.reshape(nblk, bb, s, s)).astype(jnp.bfloat16))


def pack_params(W, b, gamma, beta):
    # W: (14, H, H) in (in, out) layout, b: (14, H), gamma/beta: (4, H).
    # Stack index map: 0-3 attention1 (q,k,v,out); 4-7 combination (q,k,v,out);
    # 8-11 combination2; 12-13 GCNN.
    bf = jnp.bfloat16
    scale = 1.0 / math.sqrt(DK)
    # Fold the 1/sqrt(DK) attention / gate scales into the Q projections
    # (weights AND biases) so the kernel never scales the score tensors.
    w_qkv = jnp.concatenate([W[0] * scale, W[1], W[2]], axis=1).astype(bf)       # (H, 3H)
    b_qkv = jnp.concatenate([b[0] * scale, b[1], b[2]])[None, :]                 # (1, 3H)
    w_qk_c = jnp.stack([jnp.concatenate([W[4] * scale, W[5]], axis=1),
                        jnp.concatenate([W[8] * scale, W[9]], axis=1)]).astype(bf)  # (2, H, 2H)
    b_qk_c = jnp.stack([jnp.concatenate([b[4] * scale, b[5]]),
                        jnp.concatenate([b[8] * scale, b[9]])])[:, None, :]      # (2, 1, 2H)
    hh = [3, 6, 7, 10, 11, 12, 13]   # attn_out, c1_v, c1_out, c2_v, c2_out, gcnn_w1, gcnn_w2
    w_hh = jnp.stack([W[i] for i in hh]).astype(bf)                              # (7, H, H)
    b_hh = jnp.stack([b[i] for i in hh])[:, None, :]                             # (7, 1, H)
    ln_g = gamma[:, None, :]                                                     # (4, 1, H)
    ln_b = beta[:, None, :]                                                      # (4, 1, H)
    hmask = (jnp.arange(HIDDEN)[None, :] // DK
             == jnp.arange(HEADS)[:, None]).astype(jnp.float32)                  # (HEADS, H)
    he = hmask.T.astype(bf)     # (H, HEADS) per-head sum matrix (0/1, exact in bf16)
    het = hmask.astype(bf)      # (HEADS, H) per-head broadcast-back matrix
    return (w_qkv, b_qkv, w_qk_c, b_qk_c, w_hh, b_hh, ln_g, ln_b, he, het, hmask)


def graph_transformer_block(x, mask, pos, charem, inputP, params):
    b, s, h = x.shape
    nblk = _num_grid_blocks(b, s, h)
    n = (b // nblk) * s

    x_blk, mask_blk, pos_blk, char_blk, p_blk = _fold_inputs(
        x, mask, pos, charem, inputP, nblk)
    (w_qkv, b_qkv, w_qk_c, b_qk_c, w_hh, b_hh, ln_g, ln_b, he, het, hmask) = params

    seq_spec = lambda: pl.BlockSpec((1, n, h), lambda g: (g, 0, 0))
    sq_spec = lambda: pl.BlockSpec((1, n, n), lambda g: (g, 0, 0))

    def full_spec(a):
        zeros = (0,) * a.ndim
        # TODO(synk): at large H mark these constant-index weights with
        #             pipeline_mode=pl.Buffered(1) to avoid useless double-buffer VMEM.
        return pl.BlockSpec(a.shape, lambda g, z=zeros: z)

    out_blk = pl.pallas_call(
        _block_kernel,
        out_shape=jax.ShapeDtypeStruct((nblk, n, h), x.dtype),
        grid_spec=pltpu.PrefetchScalarGridSpec(
            num_scalar_prefetch=0,
            grid=(nblk,),
            in_specs=[
                seq_spec(),            # x (folded)
                sq_spec(),             # mask (block-diagonal)
                seq_spec(),            # pos
                seq_spec(),            # charem
                sq_spec(),             # inputP (block-diagonal, bf16)
                full_spec(w_qkv), full_spec(b_qkv),
                full_spec(w_qk_c), full_spec(b_qk_c),
                full_spec(w_hh), full_spec(b_hh),
                full_spec(ln_g), full_spec(ln_b),
                full_spec(he), full_spec(het), full_spec(hmask),
            ],
            out_specs=seq_spec()),
        compiler_params=pltpu.CompilerParams(
            dimension_semantics=("parallel",)),
    )(x_blk, mask_blk, pos_blk, char_blk, p_blk,
      w_qkv, b_qkv, w_qk_c, b_qk_c, w_hh, b_hh, ln_g, ln_b, he, het, hmask)
    return out_blk.reshape(b, s, h)


# ------------------------------- main / demo -----------------------------------
if __name__ == "__main__":
    key = jax.random.PRNGKey(0)
    ks = jax.random.split(key, 10)

    # Deterministic synthetic parameters (no checkpoint loading).
    W = jax.random.normal(ks[0], (14, HIDDEN, HIDDEN), jnp.float32) / math.sqrt(HIDDEN)
    bvec = jax.random.normal(ks[1], (14, HIDDEN), jnp.float32) * 0.02
    gamma = 1.0 + 0.05 * jax.random.normal(ks[2], (4, HIDDEN), jnp.float32)
    beta = 0.05 * jax.random.normal(ks[3], (4, HIDDEN), jnp.float32)
    params = pack_params(W, bvec, gamma, beta)

    # Inputs.
    x = jax.random.normal(ks[4], (BATCH, SEQ, HIDDEN), jnp.float32)
    pos = jax.random.normal(ks[5], (BATCH, SEQ, HIDDEN), jnp.float32)
    charem = jax.random.normal(ks[6], (BATCH, SEQ, HIDDEN), jnp.float32)

    # Attention mask: causal, 1 = attend.
    mask = jnp.tile(jnp.tril(jnp.ones((SEQ, SEQ), jnp.float32))[None], (BATCH, 1, 1))

    # Graph adjacency for the GCNN: random edges + self loops, row-normalized.
    adj = jax.random.bernoulli(ks[7], 0.3, (BATCH, SEQ, SEQ)).astype(jnp.float32)
    adj = adj + jnp.eye(SEQ, dtype=jnp.float32)[None]
    inputP = adj / jnp.sum(adj, axis=-1, keepdims=True)

    out = graph_transformer_block(x, mask, pos, charem, inputP, params)
    out = jax.block_until_ready(out)

    # Pure-JAX reference: identical folded operands and the SAME shared math
    # helpers (bf16 MXU operands, exact divides), so the only kernel/reference
    # differences are Mosaic-vs-XLA rounding.
    nblk = _num_grid_blocks(BATCH, SEQ, HIDDEN)
    x_blk, mask_blk, pos_blk, char_blk, p_blk = _fold_inputs(
        x, mask, pos, charem, inputP, nblk)
    (w_qkv, b_qkv, w_qk_c, b_qk_c, w_hh, b_hh, ln_g, ln_b, he, het, hmask) = params
    ref = jax.vmap(
        lambda xb, mb, pb, cb, Pb: _block_forward(
            xb, mb, pb, cb, Pb, w_qkv, b_qkv, w_qk_c, b_qk_c, w_hh, b_hh,
            ln_g, ln_b, he, het, hmask)
    )(x_blk, mask_blk, pos_blk, char_blk, p_blk)
    ref = jax.block_until_ready(ref.reshape(BATCH, SEQ, HIDDEN))

    assert out.shape == (BATCH, SEQ, HIDDEN)
    assert bool(jnp.allclose(out, ref, rtol=2e-2, atol=2e-2)), "mismatch vs reference"
    print("KERNEL_OK")
</pallas_src>

<mosaic_0001>
module attributes {stable_mosaic.version = 11 : i64} {
  func.func @_block_kernel(%arg0: i32, %arg1: memref<1x16x32xf32, #tpu.memory_space<vmem>>, %arg2: memref<1x16x16xf32, #tpu.memory_space<vmem>>, %arg3: memref<1x16x32xf32, #tpu.memory_space<vmem>>, %arg4: memref<1x16x32xf32, #tpu.memory_space<vmem>>, %arg5: memref<1x16x16xbf16, #tpu.memory_space<vmem>>, %arg6: memref<32x96xbf16, #tpu.memory_space<vmem>>, %arg7: memref<1x96xf32, #tpu.memory_space<vmem>>, %arg8: memref<2x32x64xbf16, #tpu.memory_space<vmem>>, %arg9: memref<2x1x64xf32, #tpu.memory_space<vmem>>, %arg10: memref<7x32x32xbf16, #tpu.memory_space<vmem>>, %arg11: memref<7x1x32xf32, #tpu.memory_space<vmem>>, %arg12: memref<4x1x32xf32, #tpu.memory_space<vmem>>, %arg13: memref<4x1x32xf32, #tpu.memory_space<vmem>>, %arg14: memref<32x4xbf16, #tpu.memory_space<vmem>>, %arg15: memref<4x32xbf16, #tpu.memory_space<vmem>>, %arg16: memref<4x32xf32, #tpu.memory_space<vmem>>, %arg17: memref<1x16x32xf32, #tpu.memory_space<vmem>>) attributes {dimension_semantics = [#tpu.dimension_semantics<parallel>], iteration_bounds = array<i64: 1>, scalar_prefetch = 0 : i64, scratch_operands = 0 : i64, tpu.core_type = #tpu.core_type<tc>, window_params = [{transform_indices = @transform_0, window_bounds = array<i64: 1, 16, 32>}, {transform_indices = @transform_1, window_bounds = array<i64: 1, 16, 16>}, {transform_indices = @transform_2, window_bounds = array<i64: 1, 16, 32>}, {transform_indices = @transform_3, window_bounds = array<i64: 1, 16, 32>}, {transform_indices = @transform_4, window_bounds = array<i64: 1, 16, 16>}, {pipeline_mode = #tpu.pipeline_mode<synchronous>, transform_indices = @transform_5, window_bounds = array<i64: 32, 96>}, {pipeline_mode = #tpu.pipeline_mode<synchronous>, transform_indices = @transform_6, window_bounds = array<i64: 1, 96>}, {pipeline_mode = #tpu.pipeline_mode<synchronous>, transform_indices = @transform_7, window_bounds = array<i64: 2, 32, 64>}, {pipeline_mode = #tpu.pipeline_mode<synchronous>, transform_indices = @transform_8, window_bounds = array<i64: 2, 1, 64>}, {pipeline_mode = #tpu.pipeline_mode<synchronous>, transform_indices = @transform_9, window_bounds = array<i64: 7, 32, 32>}, {pipeline_mode = #tpu.pipeline_mode<synchronous>, transform_indices = @transform_10, window_bounds = array<i64: 7, 1, 32>}, {pipeline_mode = #tpu.pipeline_mode<synchronous>, transform_indices = @transform_11, window_bounds = array<i64: 4, 1, 32>}, {pipeline_mode = #tpu.pipeline_mode<synchronous>, transform_indices = @transform_12, window_bounds = array<i64: 4, 1, 32>}, {pipeline_mode = #tpu.pipeline_mode<synchronous>, transform_indices = @transform_13, window_bounds = array<i64: 32, 4>}, {pipeline_mode = #tpu.pipeline_mode<synchronous>, transform_indices = @transform_14, window_bounds = array<i64: 4, 32>}, {pipeline_mode = #tpu.pipeline_mode<synchronous>, transform_indices = @transform_15, window_bounds = array<i64: 4, 32>}, {transform_indices = @transform_16, window_bounds = array<i64: 1, 16, 32>}]} {
    %c0 = arith.constant 0 : index
    %c0_0 = arith.constant 0 : index
    %c0_1 = arith.constant 0 : index
    %0 = vector.load %arg1[%c0, %c0_0, %c0_1] : memref<1x16x32xf32, #tpu.memory_space<vmem>>, vector<1x16x32xf32>
    %1 = vector.shape_cast %0 : vector<1x16x32xf32> to vector<16x32xf32>
    %c0_2 = arith.constant 0 : index
    %c0_3 = arith.constant 0 : index
    %c0_4 = arith.constant 0 : index
    %2 = vector.load %arg2[%c0_2, %c0_3, %c0_4] : memref<1x16x16xf32, #tpu.memory_space<vmem>>, vector<1x16x16xf32>
    %3 = vector.shape_cast %2 : vector<1x16x16xf32> to vector<16x16xf32>
    %c0_5 = arith.constant 0 : index
    %c0_6 = arith.constant 0 : index
    %c0_7 = arith.constant 0 : index
    %4 = vector.load %arg3[%c0_5, %c0_6, %c0_7] : memref<1x16x32xf32, #tpu.memory_space<vmem>>, vector<1x16x32xf32>
    %5 = vector.shape_cast %4 : vector<1x16x32xf32> to vector<16x32xf32>
    %c0_8 = arith.constant 0 : index
    %c0_9 = arith.constant 0 : index
    %c0_10 = arith.constant 0 : index
    %6 = vector.load %arg4[%c0_8, %c0_9, %c0_10] : memref<1x16x32xf32, #tpu.memory_space<vmem>>, vector<1x16x32xf32>
    %7 = vector.shape_cast %6 : vector<1x16x32xf32> to vector<16x32xf32>
    %c0_11 = arith.constant 0 : index
    %c0_12 = arith.constant 0 : index
    %c0_13 = arith.constant 0 : index
    %8 = vector.load %arg5[%c0_11, %c0_12, %c0_13] : memref<1x16x16xbf16, #tpu.memory_space<vmem>>, vector<1x16x16xbf16>
    %9 = vector.shape_cast %8 : vector<1x16x16xbf16> to vector<16x16xbf16>
    %c0_14 = arith.constant 0 : index
    %c0_15 = arith.constant 0 : index
    %c0_16 = arith.constant 0 : index
    %10 = vector.load %arg12[%c0_14, %c0_15, %c0_16] : memref<4x1x32xf32, #tpu.memory_space<vmem>>, vector<1x1x32xf32>
    %11 = vector.shape_cast %10 : vector<1x1x32xf32> to vector<1x32xf32>
    %c0_17 = arith.constant 0 : index
    %c0_18 = arith.constant 0 : index
    %c0_19 = arith.constant 0 : index
    %12 = vector.load %arg13[%c0_17, %c0_18, %c0_19] : memref<4x1x32xf32, #tpu.memory_space<vmem>>, vector<1x1x32xf32>
    %13 = vector.shape_cast %12 : vector<1x1x32xf32> to vector<1x32xf32>
    %cst = arith.constant dense<0.000000e+00> : vector<16xf32>
    %14 = vector.multi_reduction <add>, %1, %cst [1] : vector<16x32xf32> to vector<16xf32>
    %15 = vector.shape_cast %14 : vector<16xf32> to vector<16x1xf32>
    %cst_20 = arith.constant 3.200000e+01 : f32
    %16 = vector.broadcast %cst_20 : f32 to vector<16x1xf32>
    %17 = arith.divf %15, %16 : vector<16x1xf32>
    %18 = vector.broadcast %17 : vector<16x1xf32> to vector<16x32xf32>
    %19 = arith.subf %1, %18 : vector<16x32xf32>
    %20 = arith.mulf %19, %19 : vector<16x32xf32>
    %cst_21 = arith.constant dense<0.000000e+00> : vector<16xf32>
    %21 = vector.multi_reduction <add>, %20, %cst_21 [1] : vector<16x32xf32> to vector<16xf32>
    %22 = vector.shape_cast %21 : vector<16xf32> to vector<16x1xf32>
    %cst_22 = arith.constant 3.100000e+01 : f32
    %23 = vector.broadcast %cst_22 : f32 to vector<16x1xf32>
    %24 = arith.divf %22, %23 : vector<16x1xf32>
    %25 = vector.broadcast %17 : vector<16x1xf32> to vector<16x32xf32>
    %26 = arith.subf %1, %25 : vector<16x32xf32>
    %27 = vector.broadcast %11 : vector<1x32xf32> to vector<16x32xf32>
    %28 = arith.mulf %27, %26 : vector<16x32xf32>
    %29 = math.sqrt %24 : vector<16x1xf32>
    %cst_23 = arith.constant 9.99999997E-7 : f32
    %30 = vector.broadcast %cst_23 : f32 to vector<16x1xf32>
    %31 = arith.addf %29, %30 : vector<16x1xf32>
    %32 = vector.broadcast %31 : vector<16x1xf32> to vector<16x32xf32>
    %33 = arith.divf %28, %32 : vector<16x32xf32>
    %34 = vector.broadcast %13 : vector<1x32xf32> to vector<16x32xf32>
    %35 = arith.addf %33, %34 : vector<16x32xf32>
    %c0_24 = arith.constant 0 : index
    %c0_25 = arith.constant 0 : index
    %36 = vector.load %arg6[%c0_24, %c0_25] : memref<32x96xbf16, #tpu.memory_space<vmem>>, vector<32x96xbf16>
    %c0_26 = arith.constant 0 : index
    %c0_27 = arith.constant 0 : index
    %37 = vector.load %arg7[%c0_26, %c0_27] : memref<1x96xf32, #tpu.memory_space<vmem>>, vector<1x96xf32>
    %c0_28 = arith.constant 0 : index
    %c0_29 = arith.constant 0 : index
    %c0_30 = arith.constant 0 : index
    %38 = vector.load %arg10[%c0_28, %c0_29, %c0_30] : memref<7x32x32xbf16, #tpu.memory_space<vmem>>, vector<1x32x32xbf16>
    %39 = vector.shape_cast %38 : vector<1x32x32xbf16> to vector<32x32xbf16>
    %c0_31 = arith.constant 0 : index
    %c0_32 = arith.constant 0 : index
    %c0_33 = arith.constant 0 : index
    %40 = vector.load %arg11[%c0_31, %c0_32, %c0_33] : memref<7x1x32xf32, #tpu.memory_space<vmem>>, vector<1x1x32xf32>
    %41 = vector.shape_cast %40 : vector<1x1x32xf32> to vector<1x32xf32>
    %c0_34 = arith.constant 0 : index
    %c0_35 = arith.constant 0 : index
    %42 = vector.load %arg16[%c0_34, %c0_35] : memref<4x32xf32, #tpu.memory_space<vmem>>, vector<4x32xf32>
    %43 = arith.truncf %35 : vector<16x32xf32> to vector<16x32xbf16>
    %cst_36 = arith.constant dense<0.000000e+00> : vector<16x96xf32>
    %44 = tpu.matmul %43, %36, %cst_36 {dimension_numbers = #tpu.dot_dimension_numbers<[1], [0], [0], [1], [0, 0, 1, 1], [], []>} : vector<16x32xbf16>, vector<32x96xbf16>, vector<16x96xf32> -> vector<16x96xf32>
    %45 = vector.broadcast %37 : vector<1x96xf32> to vector<16x96xf32>
    %46 = arith.addf %44, %45 : vector<16x96xf32>
    %47 = vector.extract_strided_slice %46 {offsets = [0, 0], sizes = [16, 32], strides = [1, 1]} : vector<16x96xf32> to vector<16x32xf32>
    %48 = vector.extract_strided_slice %46 {offsets = [0, 32], sizes = [16, 32], strides = [1, 1]} : vector<16x96xf32> to vector<16x32xf32>
    %49 = arith.truncf %48 : vector<16x32xf32> to vector<16x32xbf16>
    %50 = vector.extract_strided_slice %46 {offsets = [0, 64], sizes = [16, 32], strides = [1, 1]} : vector<16x96xf32> to vector<16x32xf32>
    %51 = arith.truncf %50 : vector<16x32xf32> to vector<16x32xbf16>
    %52 = vector.shape_cast %47 : vector<16x32xf32> to vector<1x16x32xf32>
    %53 = vector.shape_cast %42 : vector<4x32xf32> to vector<4x1x32xf32>
    %54 = vector.broadcast %52 : vector<1x16x32xf32> to vector<4x16x32xf32>
    %55 = vector.broadcast %53 : vector<4x1x32xf32> to vector<4x16x32xf32>
    %56 = arith.mulf %54, %55 : vector<4x16x32xf32>
    %57 = vector.shape_cast %56 : vector<4x16x32xf32> to vector<64x32xf32>
    %58 = arith.truncf %57 : vector<64x32xf32> to vector<64x32xbf16>
    "tpu.trace_start"() <{level = 10 : i32, message = "qd,kd->qk"}> : () -> ()
    %cst_37 = arith.constant dense<0.000000e+00> : vector<64x16xf32>
    %59 = tpu.matmul %58, %49, %cst_37 {dimension_numbers = #tpu.dot_dimension_numbers<[1], [1], [0], [0], [0, 0, 1, 0], [], []>} : vector<64x32xbf16>, vector<16x32xbf16>, vector<64x16xf32> -> vector<64x16xf32>
    "tpu.trace_stop"() : () -> ()
    %60 = vector.shape_cast %59 : vector<64x16xf32> to vector<4x16x16xf32>
    %61 = vector.shape_cast %3 : vector<16x16xf32> to vector<1x16x16xf32>
    %cst_38 = arith.constant 0.000000e+00 : f32
    %62 = vector.broadcast %cst_38 : f32 to vector<1x16x16xf32>
    %63 = arith.cmpf ogt, %61, %62 : vector<1x16x16xf32>
    %cst_39 = arith.constant -1.000000e+09 : f32
    %64 = vector.shape_cast %63 : vector<1x16x16xi1> to vector<1x16x16xi1>
    %65 = vector.broadcast %64 : vector<1x16x16xi1> to vector<4x16x16xi1>
    %66 = vector.broadcast %cst_39 : f32 to vector<4x16x16xf32>
    %67 = arith.select %65, %60, %66 : vector<4x16x16xi1>, vector<4x16x16xf32>
    %cst_40 = arith.constant dense<0xFF800000> : vector<4x16xf32>
    %68 = vector.multi_reduction <maximumf>, %67, %cst_40 [2] : vector<4x16x16xf32> to vector<4x16xf32>
    %69 = vector.shape_cast %68 : vector<4x16xf32> to vector<4x16x1xf32>
    %70 = vector.broadcast %69 : vector<4x16x1xf32> to vector<4x16x16xf32>
    %71 = arith.subf %67, %70 : vector<4x16x16xf32>
    %72 = math.exp %71 : vector<4x16x16xf32>
    %cst_41 = arith.constant dense<0.000000e+00> : vector<4x16xf32>
    %73 = vector.multi_reduction <add>, %72, %cst_41 [2] : vector<4x16x16xf32> to vector<4x16xf32>
    %74 = vector.shape_cast %73 : vector<4x16xf32> to vector<4x16x1xf32>
    %75 = vector.broadcast %74 : vector<4x16x1xf32> to vector<4x16x16xf32>
    %76 = arith.divf %72, %75 : vector<4x16x16xf32>
    %77 = vector.shape_cast %76 : vector<4x16x16xf32> to vector<64x16xf32>
    %78 = arith.truncf %77 : vector<64x16xf32> to vector<64x16xbf16>
    %cst_42 = arith.constant dense<0.000000e+00> : vector<64x32xf32>
    %79 = tpu.matmul %78, %51, %cst_42 {dimension_numbers = #tpu.dot_dimension_numbers<[1], [0], [0], [1], [0, 0, 1, 1], [], []>} : vector<64x16xbf16>, vector<16x32xbf16>, vector<64x32xf32> -> vector<64x32xf32>
    %80 = vector.shape_cast %79 : vector<64x32xf32> to vector<4x16x32xf32>
    %81 = vector.shape_cast %42 : vector<4x32xf32> to vector<4x1x32xf32>
    %82 = vector.broadcast %81 : vector<4x1x32xf32> to vector<4x16x32xf32>
    %83 = arith.mulf %80, %82 : vector<4x16x32xf32>
    %cst_43 = arith.constant dense<0.000000e+00> : vector<16x32xf32>
    %84 = vector.multi_reduction <add>, %83, %cst_43 [0] : vector<4x16x32xf32> to vector<16x32xf32>
    %85 = arith.truncf %84 : vector<16x32xf32> to vector<16x32xbf16>
    %cst_44 = arith.constant dense<0.000000e+00> : vector<16x32xf32>
    %86 = tpu.matmul %85, %39, %cst_44 {dimension_numbers = #tpu.dot_dimension_numbers<[1], [0], [0], [1], [0, 0, 1, 1], [], []>} : vector<16x32xbf16>, vector<32x32xbf16>, vector<16x32xf32> -> vector<16x32xf32>
    %87 = vector.broadcast %41 : vector<1x32xf32> to vector<16x32xf32>
    %88 = arith.addf %86, %87 : vector<16x32xf32>
    %89 = arith.addf %1, %88 : vector<16x32xf32>
    %c1 = arith.constant 1 : index
    %c0_45 = arith.constant 0 : index
    %c0_46 = arith.constant 0 : index
    %90 = vector.load %arg12[%c1, %c0_45, %c0_46] : memref<4x1x32xf32, #tpu.memory_space<vmem>>, vector<1x1x32xf32>
    %91 = vector.shape_cast %90 : vector<1x1x32xf32> to vector<1x32xf32>
    %c1_47 = arith.constant 1 : index
    %c0_48 = arith.constant 0 : index
    %c0_49 = arith.constant 0 : index
    %92 = vector.load %arg13[%c1_47, %c0_48, %c0_49] : memref<4x1x32xf32, #tpu.memory_space<vmem>>, vector<1x1x32xf32>
    %93 = vector.shape_cast %92 : vector<1x1x32xf32> to vector<1x32xf32>
    %cst_50 = arith.constant dense<0.000000e+00> : vector<16xf32>
    %94 = vector.multi_reduction <add>, %89, %cst_50 [1] : vector<16x32xf32> to vector<16xf32>
    %95 = vector.shape_cast %94 : vector<16xf32> to vector<16x1xf32>
    %cst_51 = arith.constant 3.200000e+01 : f32
    %96 = vector.broadcast %cst_51 : f32 to vector<16x1xf32>
    %97 = arith.divf %95, %96 : vector<16x1xf32>
    %98 = vector.broadcast %97 : vector<16x1xf32> to vector<16x32xf32>
    %99 = arith.subf %89, %98 : vector<16x32xf32>
    %100 = arith.mulf %99, %99 : vector<16x32xf32>
    %cst_52 = arith.constant dense<0.000000e+00> : vector<16xf32>
    %101 = vector.multi_reduction <add>, %100, %cst_52 [1] : vector<16x32xf32> to vector<16xf32>
    %102 = vector.shape_cast %101 : vector<16xf32> to vector<16x1xf32>
    %cst_53 = arith.constant 3.100000e+01 : f32
    %103 = vector.broadcast %cst_53 : f32 to vector<16x1xf32>
    %104 = arith.divf %102, %103 : vector<16x1xf32>
    %105 = vector.broadcast %97 : vector<16x1xf32> to vector<16x32xf32>
    %106 = arith.subf %89, %105 : vector<16x32xf32>
    %107 = vector.broadcast %91 : vector<1x32xf32> to vector<16x32xf32>
    %108 = arith.mulf %107, %106 : vector<16x32xf32>
    %109 = math.sqrt %104 : vector<16x1xf32>
    %cst_54 = arith.constant 9.99999997E-7 : f32
    %110 = vector.broadcast %cst_54 : f32 to vector<16x1xf32>
    %111 = arith.addf %109, %110 : vector<16x1xf32>
    %112 = vector.broadcast %111 : vector<16x1xf32> to vector<16x32xf32>
    %113 = arith.divf %108, %112 : vector<16x32xf32>
    %114 = vector.broadcast %93 : vector<1x32xf32> to vector<16x32xf32>
    %115 = arith.addf %113, %114 : vector<16x32xf32>
    %c0_55 = arith.constant 0 : index
    %c0_56 = arith.constant 0 : index
    %c0_57 = arith.constant 0 : index
    %116 = vector.load %arg8[%c0_55, %c0_56, %c0_57] : memref<2x32x64xbf16, #tpu.memory_space<vmem>>, vector<1x32x64xbf16>
    %117 = vector.shape_cast %116 : vector<1x32x64xbf16> to vector<32x64xbf16>
    %c0_58 = arith.constant 0 : index
    %c0_59 = arith.constant 0 : index
    %c0_60 = arith.constant 0 : index
    %118 = vector.load %arg9[%c0_58, %c0_59, %c0_60] : memref<2x1x64xf32, #tpu.memory_space<vmem>>, vector<1x1x64xf32>
    %119 = vector.shape_cast %118 : vector<1x1x64xf32> to vector<1x64xf32>
    %c1_61 = arith.constant 1 : index
    %c0_62 = arith.constant 0 : index
    %c0_63 = arith.constant 0 : index
    %120 = vector.load %arg10[%c1_61, %c0_62, %c0_63] : memref<7x32x32xbf16, #tpu.memory_space<vmem>>, vector<1x32x32xbf16>
    %121 = vector.shape_cast %120 : vector<1x32x32xbf16> to vector<32x32xbf16>
    %c1_64 = arith.constant 1 : index
    %c0_65 = arith.constant 0 : index
    %c0_66 = arith.constant 0 : index
    %122 = vector.load %arg11[%c1_64, %c0_65, %c0_66] : memref<7x1x32xf32, #tpu.memory_space<vmem>>, vector<1x1x32xf32>
    %123 = vector.shape_cast %122 : vector<1x1x32xf32> to vector<1x32xf32>
    %c2 = arith.constant 2 : index
    %c0_67 = arith.constant 0 : index
    %c0_68 = arith.constant 0 : index
    %124 = vector.load %arg10[%c2, %c0_67, %c0_68] : memref<7x32x32xbf16, #tpu.memory_space<vmem>>, vector<1x32x32xbf16>
    %125 = vector.shape_cast %124 : vector<1x32x32xbf16> to vector<32x32xbf16>
    %c2_69 = arith.constant 2 : index
    %c0_70 = arith.constant 0 : index
    %c0_71 = arith.constant 0 : index
    %126 = vector.load %arg11[%c2_69, %c0_70, %c0_71] : memref<7x1x32xf32, #tpu.memory_space<vmem>>, vector<1x1x32xf32>
    %127 = vector.shape_cast %126 : vector<1x1x32xf32> to vector<1x32xf32>
    %c0_72 = arith.constant 0 : index
    %c0_73 = arith.constant 0 : index
    %128 = vector.load %arg14[%c0_72, %c0_73] : memref<32x4xbf16, #tpu.memory_space<vmem>>, vector<32x4xbf16>
    %c0_74 = arith.constant 0 : index
    %c0_75 = arith.constant 0 : index
    %129 = vector.load %arg15[%c0_74, %c0_75] : memref<4x32xbf16, #tpu.memory_space<vmem>>, vector<4x32xbf16>
    %130 = arith.truncf %115 : vector<16x32xf32> to vector<16x32xbf16>
    %cst_76 = arith.constant dense<0.000000e+00> : vector<16x64xf32>
    %131 = tpu.matmul %130, %117, %cst_76 {dimension_numbers = #tpu.dot_dimension_numbers<[1], [0], [0], [1], [0, 0, 1, 1], [], []>} : vector<16x32xbf16>, vector<32x64xbf16>, vector<16x64xf32> -> vector<16x64xf32>
    %132 = vector.broadcast %119 : vector<1x64xf32> to vector<16x64xf32>
    %133 = arith.addf %131, %132 : vector<16x64xf32>
    %134 = vector.extract_strided_slice %133 {offsets = [0, 0], sizes = [16, 32], strides = [1, 1]} : vector<16x64xf32> to vector<16x32xf32>
    %135 = vector.extract_strided_slice %133 {offsets = [0, 32], sizes = [16, 32], strides = [1, 1]} : vector<16x64xf32> to vector<16x32xf32>
    %136 = arith.truncf %5 : vector<16x32xf32> to vector<16x32xbf16>
    %cst_77 = arith.constant dense<0.000000e+00> : vector<16x32xf32>
    %137 = tpu.matmul %136, %121, %cst_77 {dimension_numbers = #tpu.dot_dimension_numbers<[1], [0], [0], [1], [0, 0, 1, 1], [], []>} : vector<16x32xbf16>, vector<32x32xbf16>, vector<16x32xf32> -> vector<16x32xf32>
    %138 = vector.broadcast %123 : vector<1x32xf32> to vector<16x32xf32>
    %139 = arith.addf %137, %138 : vector<16x32xf32>
    %140 = arith.mulf %134, %135 : vector<16x32xf32>
    %141 = arith.mulf %134, %139 : vector<16x32xf32>
    %142 = tpu.concatenate %140, %141 in 0 : vector<16x32xf32>, vector<16x32xf32> -> vector<32x32xf32>
    %143 = arith.truncf %142 : vector<32x32xf32> to vector<32x32xbf16>
    %cst_78 = arith.constant dense<0.000000e+00> : vector<32x4xf32>
    %144 = tpu.matmul %143, %128, %cst_78 {dimension_numbers = #tpu.dot_dimension_numbers<[1], [0], [0], [1], [0, 0, 1, 1], [], []>} : vector<32x32xbf16>, vector<32x4xbf16>, vector<32x4xf32> -> vector<32x4xf32>
    %145 = vector.extract_strided_slice %144 {offsets = [0, 0], sizes = [16, 4], strides = [1, 1]} : vector<32x4xf32> to vector<16x4xf32>
    %146 = vector.extract_strided_slice %144 {offsets = [16, 0], sizes = [16, 4], strides = [1, 1]} : vector<32x4xf32> to vector<16x4xf32>
    %147 = arith.maximumf %145, %146 : vector<16x4xf32>
    %148 = arith.subf %145, %147 : vector<16x4xf32>
    %149 = math.exp %148 : vector<16x4xf32>
    %150 = arith.subf %146, %147 : vector<16x4xf32>
    %151 = math.exp %150 : vector<16x4xf32>
    %152 = arith.addf %149, %151 : vector<16x4xf32>
    %cst_79 = arith.constant 1.000000e+00 : f32
    %153 = vector.broadcast %cst_79 : f32 to vector<16x4xf32>
    %154 = arith.divf %153, %152 : vector<16x4xf32>
    %155 = arith.mulf %149, %154 : vector<16x4xf32>
    %156 = arith.mulf %151, %154 : vector<16x4xf32>
    %157 = tpu.concatenate %155, %156 in 0 : vector<16x4xf32>, vector<16x4xf32> -> vector<32x4xf32>
    %158 = arith.truncf %157 : vector<32x4xf32> to vector<32x4xbf16>
    %cst_80 = arith.constant dense<0.000000e+00> : vector<32x32xf32>
    %159 = tpu.matmul %158, %129, %cst_80 {dimension_numbers = #tpu.dot_dimension_numbers<[1], [0], [0], [1], [0, 0, 1, 1], [], []>} : vector<32x4xbf16>, vector<4x32xbf16>, vector<32x32xf32> -> vector<32x32xf32>
    %160 = vector.extract_strided_slice %159 {offsets = [0, 0], sizes = [16, 32], strides = [1, 1]} : vector<32x32xf32> to vector<16x32xf32>
    %161 = arith.mulf %160, %135 : vector<16x32xf32>
    %162 = vector.extract_strided_slice %159 {offsets = [16, 0], sizes = [16, 32], strides = [1, 1]} : vector<32x32xf32> to vector<16x32xf32>
    %163 = arith.mulf %162, %139 : vector<16x32xf32>
    %164 = arith.addf %161, %163 : vector<16x32xf32>
    %165 = arith.truncf %164 : vector<16x32xf32> to vector<16x32xbf16>
    %cst_81 = arith.constant dense<0.000000e+00> : vector<16x32xf32>
    %166 = tpu.matmul %165, %125, %cst_81 {dimension_numbers = #tpu.dot_dimension_numbers<[1], [0], [0], [1], [0, 0, 1, 1], [], []>} : vector<16x32xbf16>, vector<32x32xbf16>, vector<16x32xf32> -> vector<16x32xf32>
    %167 = vector.broadcast %127 : vector<1x32xf32> to vector<16x32xf32>
    %168 = arith.addf %166, %167 : vector<16x32xf32>
    %169 = arith.addf %89, %168 : vector<16x32xf32>
    %c2_82 = arith.constant 2 : index
    %c0_83 = arith.constant 0 : index
    %c0_84 = arith.constant 0 : index
    %170 = vector.load %arg12[%c2_82, %c0_83, %c0_84] : memref<4x1x32xf32, #tpu.memory_space<vmem>>, vector<1x1x32xf32>
    %171 = vector.shape_cast %170 : vector<1x1x32xf32> to vector<1x32xf32>
    %c2_85 = arith.constant 2 : index
    %c0_86 = arith.constant 0 : index
    %c0_87 = arith.constant 0 : index
    %172 = vector.load %arg13[%c2_85, %c0_86, %c0_87] : memref<4x1x32xf32, #tpu.memory_space<vmem>>, vector<1x1x32xf32>
    %173 = vector.shape_cast %172 : vector<1x1x32xf32> to vector<1x32xf32>
    %cst_88 = arith.constant dense<0.000000e+00> : vector<16xf32>
    %174 = vector.multi_reduction <add>, %169, %cst_88 [1] : vector<16x32xf32> to vector<16xf32>
    %175 = vector.shape_cast %174 : vector<16xf32> to vector<16x1xf32>
    %cst_89 = arith.constant 3.200000e+01 : f32
    %176 = vector.broadcast %cst_89 : f32 to vector<16x1xf32>
    %177 = arith.divf %175, %176 : vector<16x1xf32>
    %178 = vector.broadcast %177 : vector<16x1xf32> to vector<16x32xf32>
    %179 = arith.subf %169, %178 : vector<16x32xf32>
    %180 = arith.mulf %179, %179 : vector<16x32xf32>
    %cst_90 = arith.constant dense<0.000000e+00> : vector<16xf32>
    %181 = vector.multi_reduction <add>, %180, %cst_90 [1] : vector<16x32xf32> to vector<16xf32>
    %182 = vector.shape_cast %181 : vector<16xf32> to vector<16x1xf32>
    %cst_91 = arith.constant 3.100000e+01 : f32
    %183 = vector.broadcast %cst_91 : f32 to vector<16x1xf32>
    %184 = arith.divf %182, %183 : vector<16x1xf32>
    %185 = vector.broadcast %177 : vector<16x1xf32> to vector<16x32xf32>
    %186 = arith.subf %169, %185 : vector<16x32xf32>
    %187 = vector.broadcast %171 : vector<1x32xf32> to vector<16x32xf32>
    %188 = arith.mulf %187, %186 : vector<16x32xf32>
    %189 = math.sqrt %184 : vector<16x1xf32>
    %cst_92 = arith.constant 9.99999997E-7 : f32
    %190 = vector.broadcast %cst_92 : f32 to vector<16x1xf32>
    %191 = arith.addf %189, %190 : vector<16x1xf32>
    %192 = vector.broadcast %191 : vector<16x1xf32> to vector<16x32xf32>
    %193 = arith.divf %188, %192 : vector<16x32xf32>
    %194 = vector.broadcast %173 : vector<1x32xf32> to vector<16x32xf32>
    %195 = arith.addf %193, %194 : vector<16x32xf32>
    %c1_93 = arith.constant 1 : index
    %c0_94 = arith.constant 0 : index
    %c0_95 = arith.constant 0 : index
    %196 = vector.load %arg8[%c1_93, %c0_94, %c0_95] : memref<2x32x64xbf16, #tpu.memory_space<vmem>>, vector<1x32x64xbf16>
    %197 = vector.shape_cast %196 : vector<1x32x64xbf16> to vector<32x64xbf16>
    %c1_96 = arith.constant 1 : index
    %c0_97 = arith.constant 0 : index
    %c0_98 = arith.constant 0 : index
    %198 = vector.load %arg9[%c1_96, %c0_97, %c0_98] : memref<2x1x64xf32, #tpu.memory_space<vmem>>, vector<1x1x64xf32>
    %199 = vector.shape_cast %198 : vector<1x1x64xf32> to vector<1x64xf32>
    %c3 = arith.constant 3 : index
    %c0_99 = arith.constant 0 : index
    %c0_100 = arith.constant 0 : index
    %200 = vector.load %arg10[%c3, %c0_99, %c0_100] : memref<7x32x32xbf16, #tpu.memory_space<vmem>>, vector<1x32x32xbf16>
    %201 = vector.shape_cast %200 : vector<1x32x32xbf16> to vector<32x32xbf16>
    %c3_101 = arith.constant 3 : index
    %c0_102 = arith.constant 0 : index
    %c0_103 = arith.constant 0 : index
    %202 = vector.load %arg11[%c3_101, %c0_102, %c0_103] : memref<7x1x32xf32, #tpu.memory_space<vmem>>, vector<1x1x32xf32>
    %203 = vector.shape_cast %202 : vector<1x1x32xf32> to vector<1x32xf32>
    %c4 = arith.constant 4 : index
    %c0_104 = arith.constant 0 : index
    %c0_105 = arith.constant 0 : index
    %204 = vector.load %arg10[%c4, %c0_104, %c0_105] : memref<7x32x32xbf16, #tpu.memory_space<vmem>>, vector<1x32x32xbf16>
    %205 = vector.shape_cast %204 : vector<1x32x32xbf16> to vector<32x32xbf16>
    %c4_106 = arith.constant 4 : index
    %c0_107 = arith.constant 0 : index
    %c0_108 = arith.constant 0 : index
    %206 = vector.load %arg11[%c4_106, %c0_107, %c0_108] : memref<7x1x32xf32, #tpu.memory_space<vmem>>, vector<1x1x32xf32>
    %207 = vector.shape_cast %206 : vector<1x1x32xf32> to vector<1x32xf32>
    %c0_109 = arith.constant 0 : index
    %c0_110 = arith.constant 0 : index
    %208 = vector.load %arg14[%c0_109, %c0_110] : memref<32x4xbf16, #tpu.memory_space<vmem>>, vector<32x4xbf16>
    %c0_111 = arith.constant 0 : index
    %c0_112 = arith.constant 0 : index
    %209 = vector.load %arg15[%c0_111, %c0_112] : memref<4x32xbf16, #tpu.memory_space<vmem>>, vector<4x32xbf16>
    %210 = arith.truncf %195 : vector<16x32xf32> to vector<16x32xbf16>
    %cst_113 = arith.constant dense<0.000000e+00> : vector<16x64xf32>
    %211 = tpu.matmul %210, %197, %cst_113 {dimension_numbers = #tpu.dot_dimension_numbers<[1], [0], [0], [1], [0, 0, 1, 1], [], []>} : vector<16x32xbf16>, vector<32x64xbf16>, vector<16x64xf32> -> vector<16x64xf32>
    %212 = vector.broadcast %199 : vector<1x64xf32> to vector<16x64xf32>
    %213 = arith.addf %211, %212 : vector<16x64xf32>
    %214 = vector.extract_strided_slice %213 {offsets = [0, 0], sizes = [16, 32], strides = [1, 1]} : vector<16x64xf32> to vector<16x32xf32>
    %215 = vector.extract_strided_slice %213 {offsets = [0, 32], sizes = [16, 32], strides = [1, 1]} : vector<16x64xf32> to vector<16x32xf32>
    %216 = arith.truncf %7 : vector<16x32xf32> to vector<16x32xbf16>
    %cst_114 = arith.constant dense<0.000000e+00> : vector<16x32xf32>
    %217 = tpu.matmul %216, %201, %cst_114 {dimension_numbers = #tpu.dot_dimension_numbers<[1], [0], [0], [1], [0, 0, 1, 1], [], []>} : vector<16x32xbf16>, vector<32x32xbf16>, vector<16x32xf32> -> vector<16x32xf32>
    %218 = vector.broadcast %203 : vector<1x32xf32> to vector<16x32xf32>
    %219 = arith.addf %217, %218 : vector<16x32xf32>
    %220 = arith.mulf %214, %215 : vector<16x32xf32>
    %221 = arith.mulf %214, %219 : vector<16x32xf32>
    %222 = tpu.concatenate %220, %221 in 0 : vector<16x32xf32>, vector<16x32xf32> -> vector<32x32xf32>
    %223 = arith.truncf %222 : vector<32x32xf32> to vector<32x32xbf16>
    %cst_115 = arith.constant dense<0.000000e+00> : vector<32x4xf32>
    %224 = tpu.matmul %223, %208, %cst_115 {dimension_numbers = #tpu.dot_dimension_numbers<[1], [0], [0], [1], [0, 0, 1, 1], [], []>} : vector<32x32xbf16>, vector<32x4xbf16>, vector<32x4xf32> -> vector<32x4xf32>
    %225 = vector.extract_strided_slice %224 {offsets = [0, 0], sizes = [16, 4], strides = [1, 1]} : vector<32x4xf32> to vector<16x4xf32>
    %226 = vector.extract_strided_slice %224 {offsets = [16, 0], sizes = [16, 4], strides = [1, 1]} : vector<32x4xf32> to vector<16x4xf32>
    %227 = arith.maximumf %225, %226 : vector<16x4xf32>
    %228 = arith.subf %225, %227 : vector<16x4xf32>
    %229 = math.exp %228 : vector<16x4xf32>
    %230 = arith.subf %226, %227 : vector<16x4xf32>
    %231 = math.exp %230 : vector<16x4xf32>
    %232 = arith.addf %229, %231 : vector<16x4xf32>
    %cst_116 = arith.constant 1.000000e+00 : f32
    %233 = vector.broadcast %cst_116 : f32 to vector<16x4xf32>
    %234 = arith.divf %233, %232 : vector<16x4xf32>
    %235 = arith.mulf %229, %234 : vector<16x4xf32>
    %236 = arith.mulf %231, %234 : vector<16x4xf32>
    %237 = tpu.concatenate %235, %236 in 0 : vector<16x4xf32>, vector<16x4xf32> -> vector<32x4xf32>
    %238 = arith.truncf %237 : vector<32x4xf32> to vector<32x4xbf16>
    %cst_117 = arith.constant dense<0.000000e+00> : vector<32x32xf32>
    %239 = tpu.matmul %238, %209, %cst_117 {dimension_numbers = #tpu.dot_dimension_numbers<[1], [0], [0], [1], [0, 0, 1, 1], [], []>} : vector<32x4xbf16>, vector<4x32xbf16>, vector<32x32xf32> -> vector<32x32xf32>
    %240 = vector.extract_strided_slice %239 {offsets = [0, 0], sizes = [16, 32], strides = [1, 1]} : vector<32x32xf32> to vector<16x32xf32>
    %241 = arith.mulf %240, %215 : vector<16x32xf32>
    %242 = vector.extract_strided_slice %239 {offsets = [16, 0], sizes = [16, 32], strides = [1, 1]} : vector<32x32xf32> to vector<16x32xf32>
    %243 = arith.mulf %242, %219 : vector<16x32xf32>
    %244 = arith.addf %241, %243 : vector<16x32xf32>
    %245 = arith.truncf %244 : vector<16x32xf32> to vector<16x32xbf16>
    %cst_118 = arith.constant dense<0.000000e+00> : vector<16x32xf32>
    %246 = tpu.matmul %245, %205, %cst_118 {dimension_numbers = #tpu.dot_dimension_numbers<[1], [0], [0], [1], [0, 0, 1, 1], [], []>} : vector<16x32xbf16>, vector<32x32xbf16>, vector<16x32xf32> -> vector<16x32xf32>
    %247 = vector.broadcast %207 : vector<1x32xf32> to vector<16x32xf32>
    %248 = arith.addf %246, %247 : vector<16x32xf32>
    %249 = arith.addf %169, %248 : vector<16x32xf32>
    %c3_119 = arith.constant 3 : index
    %c0_120 = arith.constant 0 : index
    %c0_121 = arith.constant 0 : index
    %250 = vector.load %arg12[%c3_119, %c0_120, %c0_121] : memref<4x1x32xf32, #tpu.memory_space<vmem>>, vector<1x1x32xf32>
    %251 = vector.shape_cast %250 : vector<1x1x32xf32> to vector<1x32xf32>
    %c3_122 = arith.constant 3 : index
    %c0_123 = arith.constant 0 : index
    %c0_124 = arith.constant 0 : index
    %252 = vector.load %arg13[%c3_122, %c0_123, %c0_124] : memref<4x1x32xf32, #tpu.memory_space<vmem>>, vector<1x1x32xf32>
    %253 = vector.shape_cast %252 : vector<1x1x32xf32> to vector<1x32xf32>
    %cst_125 = arith.constant dense<0.000000e+00> : vector<16xf32>
    %254 = vector.multi_reduction <add>, %249, %cst_125 [1] : vector<16x32xf32> to vector<16xf32>
    %255 = vector.shape_cast %254 : vector<16xf32> to vector<16x1xf32>
    %cst_126 = arith.constant 3.200000e+01 : f32
    %256 = vector.broadcast %cst_126 : f32 to vector<16x1xf32>
    %257 = arith.divf %255, %256 : vector<16x1xf32>
    %258 = vector.broadcast %257 : vector<16x1xf32> to vector<16x32xf32>
    %259 = arith.subf %249, %258 : vector<16x32xf32>
    %260 = arith.mulf %259, %259 : vector<16x32xf32>
    %cst_127 = arith.constant dense<0.000000e+00> : vector<16xf32>
    %261 = vector.multi_reduction <add>, %260, %cst_127 [1] : vector<16x32xf32> to vector<16xf32>
    %262 = vector.shape_cast %261 : vector<16xf32> to vector<16x1xf32>
    %cst_128 = arith.constant 3.100000e+01 : f32
    %263 = vector.broadcast %cst_128 : f32 to vector<16x1xf32>
    %264 = arith.divf %262, %263 : vector<16x1xf32>
    %265 = vector.broadcast %257 : vector<16x1xf32> to vector<16x32xf32>
    %266 = arith.subf %249, %265 : vector<16x32xf32>
    %267 = vector.broadcast %251 : vector<1x32xf32> to vector<16x32xf32>
    %268 = arith.mulf %267, %266 : vector<16x32xf32>
    %269 = math.sqrt %264 : vector<16x1xf32>
    %cst_129 = arith.constant 9.99999997E-7 : f32
    %270 = vector.broadcast %cst_129 : f32 to vector<16x1xf32>
    %271 = arith.addf %269, %270 : vector<16x1xf32>
    %272 = vector.broadcast %271 : vector<16x1xf32> to vector<16x32xf32>
    %273 = arith.divf %268, %272 : vector<16x32xf32>
    %274 = vector.broadcast %253 : vector<1x32xf32> to vector<16x32xf32>
    %275 = arith.addf %273, %274 : vector<16x32xf32>
    %c5 = arith.constant 5 : index
    %c0_130 = arith.constant 0 : index
    %c0_131 = arith.constant 0 : index
    %276 = vector.load %arg10[%c5, %c0_130, %c0_131] : memref<7x32x32xbf16, #tpu.memory_space<vmem>>, vector<1x32x32xbf16>
    %277 = vector.shape_cast %276 : vector<1x32x32xbf16> to vector<32x32xbf16>
    %c5_132 = arith.constant 5 : index
    %c0_133 = arith.constant 0 : index
    %c0_134 = arith.constant 0 : index
    %278 = vector.load %arg11[%c5_132, %c0_133, %c0_134] : memref<7x1x32xf32, #tpu.memory_space<vmem>>, vector<1x1x32xf32>
    %279 = vector.shape_cast %278 : vector<1x1x32xf32> to vector<1x32xf32>
    %c6 = arith.constant 6 : index
    %c0_135 = arith.constant 0 : index
    %c0_136 = arith.constant 0 : index
    %280 = vector.load %arg10[%c6, %c0_135, %c0_136] : memref<7x32x32xbf16, #tpu.memory_space<vmem>>, vector<1x32x32xbf16>
    %281 = vector.shape_cast %280 : vector<1x32x32xbf16> to vector<32x32xbf16>
    %c6_137 = arith.constant 6 : index
    %c0_138 = arith.constant 0 : index
    %c0_139 = arith.constant 0 : index
    %282 = vector.load %arg11[%c6_137, %c0_138, %c0_139] : memref<7x1x32xf32, #tpu.memory_space<vmem>>, vector<1x1x32xf32>
    %283 = vector.shape_cast %282 : vector<1x1x32xf32> to vector<1x32xf32>
    %284 = arith.truncf %275 : vector<16x32xf32> to vector<16x32xbf16>
    %cst_140 = arith.constant dense<0.000000e+00> : vector<16x32xf32>
    %285 = tpu.matmul %9, %284, %cst_140 {dimension_numbers = #tpu.dot_dimension_numbers<[1], [0], [0], [1], [0, 0, 1, 1], [], []>} : vector<16x16xbf16>, vector<16x32xbf16>, vector<16x32xf32> -> vector<16x32xf32>
    %286 = arith.truncf %285 : vector<16x32xf32> to vector<16x32xbf16>
    %cst_141 = arith.constant dense<0.000000e+00> : vector<16x32xf32>
    %287 = tpu.matmul %286, %277, %cst_141 {dimension_numbers = #tpu.dot_dimension_numbers<[1], [0], [0], [1], [0, 0, 1, 1], [], []>} : vector<16x32xbf16>, vector<32x32xbf16>, vector<16x32xf32> -> vector<16x32xf32>
    %288 = vector.broadcast %279 : vector<1x32xf32> to vector<16x32xf32>
    %289 = arith.addf %287, %288 : vector<16x32xf32>
    %cst_142 = arith.constant 5.000000e-01 : f32
    %290 = vector.broadcast %cst_142 : f32 to vector<16x32xf32>
    %291 = arith.mulf %290, %289 : vector<16x32xf32>
    %cst_143 = arith.constant 4.471500e-02 : f32
    %292 = vector.broadcast %cst_143 : f32 to vector<16x32xf32>
    %293 = arith.mulf %292, %289 : vector<16x32xf32>
    %294 = arith.mulf %293, %289 : vector<16x32xf32>
    %295 = arith.mulf %294, %289 : vector<16x32xf32>
    %296 = arith.addf %289, %295 : vector<16x32xf32>
    %cst_144 = arith.constant 0.797884583 : f32
    %297 = vector.broadcast %cst_144 : f32 to vector<16x32xf32>
    %298 = arith.mulf %297, %296 : vector<16x32xf32>
    %299 = math.tanh %298 : vector<16x32xf32>
    %cst_145 = arith.constant 1.000000e+00 : f32
    %300 = vector.broadcast %cst_145 : f32 to vector<16x32xf32>
    %301 = arith.addf %300, %299 : vector<16x32xf32>
    %302 = arith.mulf %291, %301 : vector<16x32xf32>
    %303 = arith.truncf %302 : vector<16x32xf32> to vector<16x32xbf16>
    %cst_146 = arith.constant dense<0.000000e+00> : vector<16x32xf32>
    %304 = tpu.matmul %9, %303, %cst_146 {dimension_numbers = #tpu.dot_dimension_numbers<[1], [0], [0], [1], [0, 0, 1, 1], [], []>} : vector<16x16xbf16>, vector<16x32xbf16>, vector<16x32xf32> -> vector<16x32xf32>
    %305 = arith.truncf %304 : vector<16x32xf32> to vector<16x32xbf16>
    %cst_147 = arith.constant dense<0.000000e+00> : vector<16x32xf32>
    %306 = tpu.matmul %305, %281, %cst_147 {dimension_numbers = #tpu.dot_dimension_numbers<[1], [0], [0], [1], [0, 0, 1, 1], [], []>} : vector<16x32xbf16>, vector<32x32xbf16>, vector<16x32xf32> -> vector<16x32xf32>
    %307 = vector.broadcast %283 : vector<1x32xf32> to vector<16x32xf32>
    %308 = arith.addf %306, %307 : vector<16x32xf32>
    %309 = arith.addf %249, %308 : vector<16x32xf32>
    %c0_148 = arith.constant 0 : index
    %c0_149 = arith.constant 0 : index
    %c0_150 = arith.constant 0 : index
    %310 = vector.load %arg17[%c0_148, %c0_149, %c0_150] : memref<1x16x32xf32, #tpu.memory_space<vmem>>, vector<1x16x32xf32>
    %311 = vector.shape_cast %310 : vector<1x16x32xf32> to vector<16x32xf32>
    %312 = vector.shape_cast %309 : vector<16x32xf32> to vector<1x16x32xf32>
    tpu.vector_store %arg17[%c0_148, %c0_149, %c0_150], %312 {strides = array<i32>} : memref<1x16x32xf32, #tpu.memory_space<vmem>>, vector<1x16x32xf32>,
    return
  }
  func.func @transform_0(%arg0: i32) -> (i32, i32, i32) {
    %c0_i32 = arith.constant 0 : i32
    %c0_i32_0 = arith.constant 0 : i32
    %c0_i32_1 = arith.constant 0 : i32
    return %arg0, %c0_i32, %c0_i32_0 : i32, i32, i32
  }
  func.func @transform_1(%arg0: i32) -> (i32, i32, i32) {
    %c0_i32 = arith.constant 0 : i32
    %c0_i32_0 = arith.constant 0 : i32
    %c0_i32_1 = arith.constant 0 : i32
    return %arg0, %c0_i32, %c0_i32_0 : i32, i32, i32
  }
  func.func @transform_2(%arg0: i32) -> (i32, i32, i32) {
    %c0_i32 = arith.constant 0 : i32
    %c0_i32_0 = arith.constant 0 : i32
    %c0_i32_1 = arith.constant 0 : i32
    return %arg0, %c0_i32, %c0_i32_0 : i32, i32, i32
  }
  func.func @transform_3(%arg0: i32) -> (i32, i32, i32) {
    %c0_i32 = arith.constant 0 : i32
    %c0_i32_0 = arith.constant 0 : i32
    %c0_i32_1 = arith.constant 0 : i32
    return %arg0, %c0_i32, %c0_i32_0 : i32, i32, i32
  }
  func.func @transform_4(%arg0: i32) -> (i32, i32, i32) {
    %c0_i32 = arith.constant 0 : i32
    %c0_i32_0 = arith.constant 0 : i32
    %c0_i32_1 = arith.constant 0 : i32
    return %arg0, %c0_i32, %c0_i32_0 : i32, i32, i32
  }
  func.func @transform_5(%arg0: i32) -> (i32, i32) {
    %c0_i32 = arith.constant 0 : i32
    %c0_i32_0 = arith.constant 0 : i32
    %c0_i32_1 = arith.constant 0 : i32
    return %c0_i32, %c0_i32_0 : i32, i32
  }
  func.func @transform_6(%arg0: i32) -> (i32, i32) {
    %c0_i32 = arith.constant 0 : i32
    %c0_i32_0 = arith.constant 0 : i32
    %c0_i32_1 = arith.constant 0 : i32
    return %c0_i32, %c0_i32_0 : i32, i32
  }
  func.func @transform_7(%arg0: i32) -> (i32, i32, i32) {
    %c0_i32 = arith.constant 0 : i32
    %c0_i32_0 = arith.constant 0 : i32
    %c0_i32_1 = arith.constant 0 : i32
    %c0_i32_2 = arith.constant 0 : i32
    return %c0_i32, %c0_i32_0, %c0_i32_1 : i32, i32, i32
  }
  func.func @transform_8(%arg0: i32) -> (i32, i32, i32) {
    %c0_i32 = arith.constant 0 : i32
    %c0_i32_0 = arith.constant 0 : i32
    %c0_i32_1 = arith.constant 0 : i32
    %c0_i32_2 = arith.constant 0 : i32
    return %c0_i32, %c0_i32_0, %c0_i32_1 : i32, i32, i32
  }
  func.func @transform_9(%arg0: i32) -> (i32, i32, i32) {
    %c0_i32 = arith.constant 0 : i32
    %c0_i32_0 = arith.constant 0 : i32
    %c0_i32_1 = arith.constant 0 : i32
    %c0_i32_2 = arith.constant 0 : i32
    return %c0_i32, %c0_i32_0, %c0_i32_1 : i32, i32, i32
  }
  func.func @transform_10(%arg0: i32) -> (i32, i32, i32) {
    %c0_i32 = arith.constant 0 : i32
    %c0_i32_0 = arith.constant 0 : i32
    %c0_i32_1 = arith.constant 0 : i32
    %c0_i32_2 = arith.constant 0 : i32
    return %c0_i32, %c0_i32_0, %c0_i32_1 : i32, i32, i32
  }
  func.func @transform_11(%arg0: i32) -> (i32, i32, i32) {
    %c0_i32 = arith.constant 0 : i32
    %c0_i32_0 = arith.constant 0 : i32
    %c0_i32_1 = arith.constant 0 : i32
    %c0_i32_2 = arith.constant 0 : i32
    return %c0_i32, %c0_i32_0, %c0_i32_1 : i32, i32, i32
  }
  func.func @transform_12(%arg0: i32) -> (i32, i32, i32) {
    %c0_i32 = arith.constant 0 : i32
    %c0_i32_0 = arith.constant 0 : i32
    %c0_i32_1 = arith.constant 0 : i32
    %c0_i32_2 = arith.constant 0 : i32
    return %c0_i32, %c0_i32_0, %c0_i32_1 : i32, i32, i32
  }
  func.func @transform_13(%arg0: i32) -> (i32, i32) {
    %c0_i32 = arith.constant 0 : i32
    %c0_i32_0 = arith.constant 0 : i32
    %c0_i32_1 = arith.constant 0 : i32
    return %c0_i32, %c0_i32_0 : i32, i32
  }
  func.func @transform_14(%arg0: i32) -> (i32, i32) {
    %c0_i32 = arith.constant 0 : i32
    %c0_i32_0 = arith.constant 0 : i32
    %c0_i32_1 = arith.constant 0 : i32
    return %c0_i32, %c0_i32_0 : i32, i32
  }
  func.func @transform_15(%arg0: i32) -> (i32, i32) {
    %c0_i32 = arith.constant 0 : i32
    %c0_i32_0 = arith.constant 0 : i32
    %c0_i32_1 = arith.constant 0 : i32
    return %c0_i32, %c0_i32_0 : i32, i32
  }
  func.func @transform_16(%arg0: i32) -> (i32, i32, i32) {
    %c0_i32 = arith.constant 0 : i32
    %c0_i32_0 = arith.constant 0 : i32
    %c0_i32_1 = arith.constant 0 : i32
    return %arg0, %c0_i32, %c0_i32_0 : i32, i32, i32
  }
}

</mosaic_0001>

<llo_original>
// kernel: tpu_custom_call.1
$region0: #{tpu_custom_call.1}
  #allocation0 [shape = 'u32[]', space=smem, size = 0x4, offset = 0x4, fixed_abs, tag = 'smem constant byte address 0x4 - core index']
  #allocation1 [shape = 'u32[72,128]{1,0:T(1,128)}', space=vmem, size = 0x9000, scoped, tag = 'internal scratch']
  %s0 = inlined_call_operand.vmem [shape: f32[1,16,32], index: 0, kind: input, shape index: {}]
  %s1 = inlined_call_operand.hbm [shape: f32[1,16,16], index: 1, kind: input, shape index: {}]
  %s2 = inlined_call_operand.hbm [shape: f32[1,16,32], index: 2, kind: input, shape index: {}]
  %s3 = inlined_call_operand.hbm [shape: f32[1,16,32], index: 3, kind: input, shape index: {}]
  %s4 = inlined_call_operand.hbm [shape: bf16[1,16,16], index: 4, kind: input, shape index: {}]
  %s5 = inlined_call_operand.hbm [shape: bf16[32,96], index: 5, kind: input, shape index: {}]
  %s6 = inlined_call_operand.hbm [shape: f32[1,96], index: 6, kind: input, shape index: {}]
  %s7 = inlined_call_operand.hbm [shape: bf16[2,32,64], index: 7, kind: input, shape index: {}]
  %s8 = inlined_call_operand.vmem [shape: f32[2,1,64], index: 8, kind: input, shape index: {}]
  %s9 = inlined_call_operand.hbm [shape: bf16[7,32,32], index: 9, kind: input, shape index: {}]
  %s10 = inlined_call_operand.vmem [shape: f32[7,1,32], index: 10, kind: input, shape index: {}]
  %s11 = inlined_call_operand.hbm [shape: f32[4,1,32], index: 11, kind: input, shape index: {}]
  %s12 = inlined_call_operand.hbm [shape: f32[4,1,32], index: 12, kind: input, shape index: {}]
  %s13 = inlined_call_operand.vmem [shape: bf16[32,4], index: 13, kind: input, shape index: {}]
  %s14 = inlined_call_operand.hbm [shape: bf16[4,32], index: 14, kind: input, shape index: {}]
  %s15 = inlined_call_operand.vmem [shape: f32[4,32], index: 15, kind: input, shape index: {}]
  %s16 = inlined_call_operand.hbm [shape: f32[1,16,32], index: 16, kind: output, shape index: {}]
  %s17 = sld [smem:[#allocation0]]
  $region118: #{tpu_custom_call.1} parent=0
    _
  %s19 = ssub.s32 1, %s17
  %s20 = scalar_select 0, %s19, %s17
  $region1: #{tpu_custom_call.1} parent=0
    #allocation2 [shape = 'u8[8192]{0}', space=vmem, size = 0x2000, scoped, tag = 'input window, operand 1, single buffered']
    #allocation3 [shape = 's32[1]{0}', space=sflag, size = 0x4, scoped, tag = 'scoped memory for tpu_custom_call.1']
    #allocation4 [shape = 's32[1]{0}', space=sflag, size = 0x4, scoped, tag = 'scoped memory for tpu_custom_call.1']
    #allocation5 [shape = 'u8[8192]{0}', space=vmem, size = 0x2000, scoped, tag = 'input window, operand 2, single buffered']
    #allocation6 [shape = 's32[1]{0}', space=sflag, size = 0x4, scoped, tag = 'scoped memory for tpu_custom_call.1']
    #allocation7 [shape = 'u8[8192]{0}', space=vmem, size = 0x2000, scoped, tag = 'input window, operand 3, single buffered']
    #allocation8 [shape = 'u8[4096]{0}', space=vmem, size = 0x1000, scoped, tag = 'input window, operand 4, single buffered']
    #allocation9 [shape = 's32[1]{0}', space=sflag, size = 0x4, scoped, tag = 'scoped memory for tpu_custom_call.1']
    #allocation10 [shape = 'u8[8192]{0}', space=vmem, size = 0x2000, scoped, tag = 'input window, operand 5, single buffered']
    #allocation11 [shape = 'u8[512]{0}', space=vmem, size = 0x400, scoped, tag = 'input window, operand 6, single buffered']
    #allocation12 [shape = 's32[1]{0}', space=sflag, size = 0x4, scoped, tag = 'scoped memory for tpu_custom_call.1']
    #allocation13 [shape = 'u8[16384]{0}', space=vmem, size = 0x4000, scoped, tag = 'input window, operand 7, single buffered']
    #allocation14 [shape = 'u8[57344]{0}', space=vmem, size = 0xe000, scoped, tag = 'input window, operand 9, single buffered']
    #allocation15 [shape = 's32[1]{0}', space=sflag, size = 0x4, scoped, tag = 'scoped memory for tpu_custom_call.1']
    #allocation16 [shape = 'u8[2048]{0}', space=vmem, size = 0x800, scoped, tag = 'input window, operand 11, single buffered']
    #allocation17 [shape = 'u8[2048]{0}', space=vmem, size = 0x800, scoped, tag = 'input window, operand 12, single buffered']
    #allocation18 [shape = 's32[1]{0}', space=sflag, size = 0x4, scoped, tag = 'scoped memory for tpu_custom_call.1']
    #allocation19 [shape = 'u8[1024]{0}', space=vmem, size = 0x400, scoped, tag = 'input window, operand 14, single buffered']
    #allocation20 [shape = 'u8[8192]{0}', space=vmem, size = 0x2000, scoped, tag = 'output window, operand 0, single buffered']
    %21 = vsyncpa [#allocation3], 0
    %22 = vsyncpa [#allocation6], 0
    %23 = vsyncpa [#allocation9], 0
    %24 = vsyncpa [#allocation12], 0
    %25 = vsyncpa [#allocation15], 0
    %26 = vsyncpa [#allocation18], 0
    %27 = vsyncpa [#allocation4], 0
    // Predicated region
    $region2: #{tpu_custom_call.1} parent=1 // pred_check
      _
    $region3: #{tpu_custom_call.1} parent=1 // pred_check_branch
      %29 = sbr.rel (0) target = $region5
    $region4: #{tpu_custom_call.1} parent=1 // pred_region
      _
    $region5: #{tpu_custom_call.1} parent=1 // pred_fallthru
      _
    // Predicated region
    $region6: #{tpu_custom_call.1} parent=1 // pred_check
      _
    $region7: #{tpu_custom_call.1} parent=1 // pred_check_branch
      %31 = sbr.rel (0) target = $region9
    $region8: #{tpu_custom_call.1} parent=1 // pred_region
      %33 = vsyncadd [#allocation3], 0
      %s34 = sshll.u32 %s1, 4
      %s35 = int_to_ptr.hbm [resolvable:$true] %s34
      %s36 = sshll.u32 [#allocation2], 4
      %s37 = int_to_ptr.vmem [resolvable:$true] %s36
      %42 = dma.hbm_to_vmem [thread:$0]  %s35, 256, %s37, [#allocation3], 128, 128, 8
    $region9: #{tpu_custom_call.1} parent=1 // pred_fallthru
      _
    // Predicated region
    $region10: #{tpu_custom_call.1} parent=1 // pred_check
      _
    $region11: #{tpu_custom_call.1} parent=1 // pred_check_branch
      %44 = sbr.rel (0) target = $region13
    $region12: #{tpu_custom_call.1} parent=1 // pred_region
      %46 = vsyncadd [#allocation6], 0
      %s47 = sshll.u32 %s2, 4
      %s48 = int_to_ptr.hbm [resolvable:$true] %s47
      %s49 = sshll.u32 [#allocation5], 4
      %s50 = int_to_ptr.vmem [resolvable:$true] %s49
      %55 = dma.hbm_to_vmem [thread:$0]  %s48, 256, %s50, [#allocation6], 128, 128, 8
    $region13: #{tpu_custom_call.1} parent=1 // pred_fallthru
      _
    // Predicated region
    $region14: #{tpu_custom_call.1} parent=1 // pred_check
      _
    $region15: #{tpu_custom_call.1} parent=1 // pred_check_branch
      %57 = sbr.rel (0) target = $region17
    $region16: #{tpu_custom_call.1} parent=1 // pred_region
      %59 = vsyncadd [#allocation6], 0
      %s60 = sshll.u32 %s3, 4
      %s61 = int_to_ptr.hbm [resolvable:$true] %s60
      %s62 = sshll.u32 [#allocation7], 4
      %s63 = int_to_ptr.vmem [resolvable:$true] %s62
      %68 = dma.hbm_to_vmem [thread:$0]  %s61, 256, %s63, [#allocation6], 128, 128, 8
    $region17: #{tpu_custom_call.1} parent=1 // pred_fallthru
      _
    // Predicated region
    $region18: #{tpu_custom_call.1} parent=1 // pred_check
      _
    $region19: #{tpu_custom_call.1} parent=1 // pred_check_branch
      %70 = sbr.rel (0) target = $region21
    $region20: #{tpu_custom_call.1} parent=1 // pred_region
      %72 = vsyncadd [#allocation9], 0
      %s73 = sshll.u32 %s4, 4
      %s74 = int_to_ptr.hbm [resolvable:$true] %s73
      %s75 = sshll.u32 [#allocation8], 4
      %s76 = int_to_ptr.vmem [resolvable:$true] %s75
      %81 = dma.hbm_to_vmem [thread:$0]  %s74, 128, %s76, [#allocation9], 64, 64, 4
    $region21: #{tpu_custom_call.1} parent=1 // pred_fallthru
      _
    // Predicated region
    $region22: #{tpu_custom_call.1} parent=1 // pred_check
      _
    $region23: #{tpu_custom_call.1} parent=1 // pred_check_branch
      %83 = sbr.rel (0) target = $region25
    $region24: #{tpu_custom_call.1} parent=1 // pred_region
      %85 = vsyncadd [#allocation9], 0
      %s86 = sshll.u32 %s5, 4
      %s87 = int_to_ptr.hbm [resolvable:$true] %s86
      %s88 = sshll.u32 [#allocation10], 4
      %s89 = int_to_ptr.vmem [resolvable:$true] %s88
      %94 = dma.hbm_to_vmem [thread:$0]  %s87, 256, %s89, [#allocation9], 64, 64, 4
    $region25: #{tpu_custom_call.1} parent=1 // pred_fallthru
      _
    // Predicated region
    $region26: #{tpu_custom_call.1} parent=1 // pred_check
      _
    $region27: #{tpu_custom_call.1} parent=1 // pred_check_branch
      %96 = sbr.rel (0) target = $region29
    $region28: #{tpu_custom_call.1} parent=1 // pred_region
      %98 = vsyncadd [#allocation12], 0
      %s100 = sshll.u32 %s6, 4
      %s101 = int_to_ptr.hbm [resolvable:$true] %s100
      %s102 = sshll.u32 [#allocation11], 4
      %s103 = int_to_ptr.vmem [resolvable:$true] %s102
      %105 = dma.hbm_to_vmem [thread:$0]  %s101, 16, %s103, [#allocation12]
    $region29: #{tpu_custom_call.1} parent=1 // pred_fallthru
      _
    // Predicated region
    $region30: #{tpu_custom_call.1} parent=1 // pred_check
      _
    $region31: #{tpu_custom_call.1} parent=1 // pred_check_branch
      %107 = sbr.rel (0) target = $region33
    $region32: #{tpu_custom_call.1} parent=1 // pred_region
      %109 = vsyncadd [#allocation12], 0
      %s110 = sshll.u32 %s7, 4
      %s111 = int_to_ptr.hbm [resolvable:$true] %s110
      %s112 = sshll.u32 [#allocation13], 4
      %s113 = int_to_ptr.vmem [resolvable:$true] %s112
      %118 = dma.hbm_to_vmem [thread:$0]  %s111, 512, %s113, [#allocation12], 64, 64, 4
    $region33: #{tpu_custom_call.1} parent=1 // pred_fallthru
      _
    // Predicated region
    $region34: #{tpu_custom_call.1} parent=1 // pred_check
      _
    $region35: #{tpu_custom_call.1} parent=1 // pred_check_branch
      %120 = sbr.rel (0) target = $region37
    $region36: #{tpu_custom_call.1} parent=1 // pred_region
      _
    $region37: #{tpu_custom_call.1} parent=1 // pred_fallthru
      _
    // Predicated region
    $region38: #{tpu_custom_call.1} parent=1 // pred_check
      _
    $region39: #{tpu_custom_call.1} parent=1 // pred_check_branch
      %122 = sbr.rel (0) target = $region41
    $region40: #{tpu_custom_call.1} parent=1 // pred_region
      %124 = vsyncadd [#allocation15], 0
      %s125 = sshll.u32 %s9, 4
      %s126 = int_to_ptr.hbm [resolvable:$true] %s125
      %s127 = sshll.u32 [#allocation14], 4
      %s128 = int_to_ptr.vmem [resolvable:$true] %s127
      %133 = dma.hbm_to_vmem [thread:$0]  %s126, 1792, %s128, [#allocation15], 64, 64, 4
    $region41: #{tpu_custom_call.1} parent=1 // pred_fallthru
      _
    // Predicated region
    $region42: #{tpu_custom_call.1} parent=1 // pred_check
      _
    $region43: #{tpu_custom_call.1} parent=1 // pred_check_branch
      %135 = sbr.rel (0) target = $region45
    $region44: #{tpu_custom_call.1} parent=1 // pred_region
      _
    $region45: #{tpu_custom_call.1} parent=1 // pred_fallthru
      _
    // Predicated region
    $region46: #{tpu_custom_call.1} parent=1 // pred_check
      _
    $region47: #{tpu_custom_call.1} parent=1 // pred_check_branch
      %137 = sbr.rel (0) target = $region49
    $region48: #{tpu_custom_call.1} parent=1 // pred_region
      %139 = vsyncadd [#allocation15], 0
      %s140 = sshll.u32 %s11, 4
      %s141 = int_to_ptr.hbm [resolvable:$true] %s140
      %s142 = sshll.u32 [#allocation16], 4
      %s143 = int_to_ptr.vmem [resolvable:$true] %s142
      %148 = dma.hbm_to_vmem [thread:$0]  %s141, 64, %s143, [#allocation15], 16, 16, 1
    $region49: #{tpu_custom_call.1} parent=1 // pred_fallthru
      _
    // Predicated region
    $region50: #{tpu_custom_call.1} parent=1 // pred_check
      _
    $region51: #{tpu_custom_call.1} parent=1 // pred_check_branch
      %150 = sbr.rel (0) target = $region53
    $region52: #{tpu_custom_call.1} parent=1 // pred_region
      %152 = vsyncadd [#allocation18], 0
      %s153 = sshll.u32 %s12, 4
      %s154 = int_to_ptr.hbm [resolvable:$true] %s153
      %s155 = sshll.u32 [#allocation17], 4
      %s156 = int_to_ptr.vmem [resolvable:$true] %s155
      %161 = dma.hbm_to_vmem [thread:$0]  %s154, 64, %s156, [#allocation18], 16, 16, 1
    $region53: #{tpu_custom_call.1} parent=1 // pred_fallthru
      _
    // Predicated region
    $region54: #{tpu_custom_call.1} parent=1 // pred_check
      _
    $region55: #{tpu_custom_call.1} parent=1 // pred_check_branch
      %163 = sbr.rel (0) target = $region57
    $region56: #{tpu_custom_call.1} parent=1 // pred_region
      _
    $region57: #{tpu_custom_call.1} parent=1 // pred_fallthru
      _
    // Predicated region
    $region58: #{tpu_custom_call.1} parent=1 // pred_check
      _
    $region59: #{tpu_custom_call.1} parent=1 // pred_check_branch
      %165 = sbr.rel (0) target = $region61
    $region60: #{tpu_custom_call.1} parent=1 // pred_region
      %167 = vsyncadd [#allocation18], 0
      %s169 = sshll.u32 %s14, 4
      %s170 = int_to_ptr.hbm [resolvable:$true] %s169
      %s171 = sshll.u32 [#allocation19], 4
      %s172 = int_to_ptr.vmem [resolvable:$true] %s171
      %174 = dma.hbm_to_vmem [thread:$0]  %s170, 32, %s172, [#allocation18]
    $region61: #{tpu_custom_call.1} parent=1 // pred_fallthru
      _
    // Predicated region
    $region62: #{tpu_custom_call.1} parent=1 // pred_check
      _
    $region63: #{tpu_custom_call.1} parent=1 // pred_check_branch
      %176 = sbr.rel (0) target = $region65
    $region64: #{tpu_custom_call.1} parent=1 // pred_region
      _
    $region65: #{tpu_custom_call.1} parent=1 // pred_fallthru
      _
    // Predicated region
    $region66: #{tpu_custom_call.1} parent=1 // pred_check
      _
    $region67: #{tpu_custom_call.1} parent=1 // pred_check_branch
      %178 = sbr.rel (0) target = $region69
    $region68: #{tpu_custom_call.1} parent=1 // pred_region
      %180 = dma.done [#allocation3], 256
    $region69: #{tpu_custom_call.1} parent=1 // pred_fallthru
      _
    // Predicated region
    $region70: #{tpu_custom_call.1} parent=1 // pred_check
      _
    $region71: #{tpu_custom_call.1} parent=1 // pred_check_branch
      %182 = sbr.rel (0) target = $region73
    $region72: #{tpu_custom_call.1} parent=1 // pred_region
      %184 = dma.done [#allocation6], 256
    $region73: #{tpu_custom_call.1} parent=1 // pred_fallthru
      _
    // Predicated region
    $region74: #{tpu_custom_call.1} parent=1 // pred_check
      _
    $region75: #{tpu_custom_call.1} parent=1 // pred_check_branch
      %186 = sbr.rel (0) target = $region77
    $region76: #{tpu_custom_call.1} parent=1 // pred_region
      %188 = dma.done [#allocation6], 256
    $region77: #{tpu_custom_call.1} parent=1 // pred_fallthru
      _
    // Predicated region
    $region78: #{tpu_custom_call.1} parent=1 // pred_check
      _
    $region79: #{tpu_custom_call.1} parent=1 // pred_check_branch
      %190 = sbr.rel (0) target = $region81
    $region80: #{tpu_custom_call.1} parent=1 // pred_region
      %192 = dma.done [#allocation9], 128
    $region81: #{tpu_custom_call.1} parent=1 // pred_fallthru
      _
    // Predicated region
    $region82: #{tpu_custom_call.1} parent=1 // pred_check
      _
    $region83: #{tpu_custom_call.1} parent=1 // pred_check_branch
      %194 = sbr.rel (0) target = $region85
    $region84: #{tpu_custom_call.1} parent=1 // pred_region
      %196 = dma.done [#allocation9], 256
    $region85: #{tpu_custom_call.1} parent=1 // pred_fallthru
      _
    // Predicated region
    $region86: #{tpu_custom_call.1} parent=1 // pred_check
      _
    $region87: #{tpu_custom_call.1} parent=1 // pred_check_branch
      %198 = sbr.rel (0) target = $region89
    $region88: #{tpu_custom_call.1} parent=1 // pred_region
      %200 = dma.done [#allocation12], 16
    $region89: #{tpu_custom_call.1} parent=1 // pred_fallthru
      _
    // Predicated region
    $region90: #{tpu_custom_call.1} parent=1 // pred_check
      _
    $region91: #{tpu_custom_call.1} parent=1 // pred_check_branch
      %202 = sbr.rel (0) target = $region93
    $region92: #{tpu_custom_call.1} parent=1 // pred_region
      %204 = dma.done [#allocation12], 512
    $region93: #{tpu_custom_call.1} parent=1 // pred_fallthru
      _
    // Predicated region
    $region94: #{tpu_custom_call.1} parent=1 // pred_check
      _
    $region95: #{tpu_custom_call.1} parent=1 // pred_check_branch
      %206 = sbr.rel (0) target = $region97
    $region96: #{tpu_custom_call.1} parent=1 // pred_region
      %208 = dma.done [#allocation15], 1792
    $region97: #{tpu_custom_call.1} parent=1 // pred_fallthru
      _
    // Predicated region
    $region98: #{tpu_custom_call.1} parent=1 // pred_check
      _
    $region99: #{tpu_custom_call.1} parent=1 // pred_check_branch
      %210 = sbr.rel (0) target = $region101
    $region100: #{tpu_custom_call.1} parent=1 // pred_region
      %212 = dma.done [#allocation15], 64
    $region101: #{tpu_custom_call.1} parent=1 // pred_fallthru
      _
    // Predicated region
    $region102: #{tpu_custom_call.1} parent=1 // pred_check
      _
    $region103: #{tpu_custom_call.1} parent=1 // pred_check_branch
      %214 = sbr.rel (0) target = $region105
    $region104: #{tpu_custom_call.1} parent=1 // pred_region
      %216 = dma.done [#allocation18], 64
    $region105: #{tpu_custom_call.1} parent=1 // pred_fallthru
      _
    // Predicated region
    $region106: #{tpu_custom_call.1} parent=1 // pred_check
      _
    $region107: #{tpu_custom_call.1} parent=1 // pred_check_branch
      %218 = sbr.rel (0) target = $region109
    $region108: #{tpu_custom_call.1} parent=1 // pred_region
      %220 = dma.done [#allocation18], 32
    $region109: #{tpu_custom_call.1} parent=1 // pred_fallthru
      _
    %v222 = vld [vmem:[%s0] sm:$0xff]
    %v223 = vld [vmem:[%s0 + $0x8] sm:$0xff]
    %v224 = vld [vmem:[#allocation2] sm:$0xff]
    %v225 = vld [vmem:[#allocation2 + $0x8] sm:$0xff]
    %v226 = vld [vmem:[#allocation5] sm:$0xff]
    %v227 = vld [vmem:[#allocation5 + $0x8] sm:$0xff]
    %v228 = vld [vmem:[#allocation7] sm:$0xff]
    %v229 = vld [vmem:[#allocation7 + $0x8] sm:$0xff]
    %v230 = vld [vmem:[#allocation8] sm:$0xf]
    %v231 = vld [vmem:[#allocation8 + $0x4] sm:$0xf]
    %v232 = vld [vmem:[#allocation16] sm:$0x1]
    %v233 = vld [vmem:[#allocation17] sm:$0x1]
    %vm234 = vcmask 261120
    %v235 = vsel %vm234, %v222, 0.0
    %236 = vadd.xlane.f32.xlu0 %v235
    %v237 = vpop.xlane.xlu0 %236
    %v238 = vsel %vm234, %v223, 0.0
    %239 = vadd.xlane.f32.xlu0 %v238
    %v240 = vpop.xlane.xlu0 %239
    %v241 = vrcp.pop 32.0
    %v242 = vmul.f32 32.0, %v241
    %v243 = vsub.f32 1.0, %v242
    %v244 = vmul.f32 %v241, %v243
    %v245 = vadd.f32 %v241, %v244
    %vm246 = vweird.f32 %v241
    %v247 = vsel %vm246, %v241, %v245
    %v248 = vmul.f32 %v237, %v247
    %v249 = vmul.f32 %v240, %v247
    %v250 = vsub.f32 %v222, %v248
    %v251 = vsub.f32 %v223, %v249
    %v252 = vmul.f32 %v250, %v250
    %v253 = vmul.f32 %v251, %v251
    %v254 = vsel %vm234, %v252, 0.0
    %255 = vadd.xlane.f32.xlu0 %v254
    %v256 = vpop.xlane.xlu0 %255
    %v257 = vsel %vm234, %v253, 0.0
    %258 = vadd.xlane.f32.xlu0 %v257
    %v259 = vpop.xlane.xlu0 %258
    %v260 = vrcp.pop 31.0
    %v261 = vmul.f32 31.0, %v260
    %v262 = vsub.f32 1.0, %v261
    %v263 = vmul.f32 %v260, %v262
    %v264 = vadd.f32 %v260, %v263
    %vm265 = vweird.f32 %v260
    %v266 = vsel %vm265, %v260, %v264
    %v267 = vmul.f32 %v256, %v266
    %v268 = vmul.f32 %v259, %v266
    %v270 = vperm.slane %v232, 0
    %v272 = vmul.f32 %v270, %v250
    %v273 = vmul.f32 %v270, %v251
    %v274 = vrsqrt.pop %v267
    %v275 = vmul.f32 %v274, %v267
    %v276 = vmul.f32 %v275, %v274
    %v277 = vmul.f32 0.5, %v276
    %v278 = vsub.f32 1.5, %v277
    %v279 = vmul.f32 %v274, %v278
    %v280 = vmul.f32 %v267, %v279
    %vm281 = vcmp.eq.f32.partialorder %v267, inf
    %v282 = vsel %vm281, %v267, %v280
    %vm283 = vcmp.eq.f32.partialorder %v267, 0.0
    %v284 = vand.u32 %v267, 2147483648
    %v285 = vsel %vm283, %v284, %v282
    %v286 = vrsqrt.pop %v268
    %v287 = vmul.f32 %v286, %v268
    %v288 = vmul.f32 %v287, %v286
    %v289 = vmul.f32 0.5, %v288
    %v290 = vsub.f32 1.5, %v289
    %v291 = vmul.f32 %v286, %v290
    %v292 = vmul.f32 %v268, %v291
    %vm293 = vcmp.eq.f32.partialorder %v268, inf
    %v294 = vsel %vm293, %v268, %v292
    %vm295 = vcmp.eq.f32.partialorder %v268, 0.0
    %v296 = vand.u32 %v268, 2147483648
    %v297 = vsel %vm295, %v296, %v294
    %v298 = vadd.f32 %v285, 1e-06
    %v299 = vadd.f32 %v297, 1e-06
    %v300 = vrcp.pop %v298
    %v301 = vmul.f32 %v298, %v300
    %v302 = vsub.f32 1.0, %v301
    %v303 = vmul.f32 %v300, %v302
    %v304 = vadd.f32 %v300, %v303
    %vm305 = vweird.f32 %v298
    %vm306 = vweird.f32 %v300
    %vm307 = vmor %vm305, %vm306
    %v308 = vsel %vm307, %v300, %v304
    %v309 = vand.u32 2147483647, %v298
    %vm310 = vcmp.eq.f32.partialorder %v309, 8.507059e+37
    %v311 = vand.u32 %v298, 2147483648
    %v312 = vor.u32 1.1754944e-38, %v311
    %v313 = vsel %vm310, %v312, %v308
    %v314 = vmul.f32 %v272, %v313
    %v315 = vrcp.pop %v299
    %v316 = vmul.f32 %v299, %v315
    %v317 = vsub.f32 1.0, %v316
    %v318 = vmul.f32 %v315, %v317
    %v319 = vadd.f32 %v315, %v318
    %vm320 = vweird.f32 %v299
    %vm321 = vweird.f32 %v315
    %vm322 = vmor %vm320, %vm321
    %v323 = vsel %vm322, %v315, %v319
    %v324 = vand.u32 2147483647, %v299
    %vm325 = vcmp.eq.f32.partialorder %v324, 8.507059e+37
    %v326 = vand.u32 %v299, 2147483648
    %v327 = vor.u32 1.1754944e-38, %v326
    %v328 = vsel %vm325, %v327, %v323
    %v329 = vmul.f32 %v273, %v328
    %v331 = vperm.slane %v233, 0
    %v333 = vadd.f32 %v314, %v331
    %v334 = vadd.f32 %v329, %v331
    %v335 = vld [vmem:[#allocation10] sm:$0xf]
    %v336 = vld [vmem:[#allocation10 + $0x4] sm:$0xf]
    %v337 = vld [vmem:[#allocation10 + $0x8] sm:$0xf]
    %v338 = vld [vmem:[#allocation10 + $0xc] sm:$0xf]
    %v339 = vld [vmem:[#allocation11] sm:$0x1]
    %v340 = vld [vmem:[#allocation14] sm:$0xf]
    %v341 = vld [vmem:[#allocation14 + $0x4] sm:$0xf]
    %v342 = vld [vmem:[#allocation14 + $0x8] sm:$0xf]
    %v343 = vld [vmem:[#allocation14 + $0xc] sm:$0xf]
    %v344 = vld [vmem:[%s10] sm:$0x1]
    %v345 = vld [vmem:[%s15] sm:$0xf]
    %v346 = vpack.c.bf16 %v334, %v333
    %v348 = vperm.slane %v339, 0
    %v354 = vunpack.c.l.b16 %v335
    %v355 = vunpack.c.l.b16 %v336
    %v356 = vunpack.c.l.b16 %v337
    %v357 = vunpack.c.l.b16 %v338
    %v358 = vpack.c.b16 %v355, %v354
    %v359 = vpack.c.b16 %v357, %v356
    %v363 = vsel %vm234, %v346, 0
    %365 = vmatpush.bf16.msra.mxu0 0
    %366 = vmatpush.bf16.msra.mxu0 0
    %367 = vmatpush.bf16.msra.mxu0 0
    %368 = vmatpush.bf16.msra.mxu0 0
    %369 = vmatpush.bf16.msra.mxu0 0
    %370 = vmatpush.bf16.msra.mxu0 0
    %371 = vmatpush.bf16.msra.mxu0 %v359
    %372 = vmatpush.bf16.msra.mxu0 %v358
    %373 = vmatmul.bf16.gmra.mxu0 %v363
    %v374 = vpop.f32.mrf.mxu0
    %v375 = vadd.f32 %v348, %v374
    %v376 = vpop.f32.mrf.mxu0
    %v377 = vadd.f32 %v348, %v376
    %378 = vdwg.mxu0
    %v379 = vpack.c.bf16 %v377, %v375
    %v381 = vrot.slane %v345, 1
    %v382 = vrot.slane %v345, 2
    %v383 = vrot.slane %v345, 3
    %v384 = vperm.slane %v345, 0
    %v385 = vperm.slane %v381, 0
    %v386 = vperm.slane %v382, 0
    %v387 = vperm.slane %v383, 0
    %v392 = vmul.f32 %v375, %v384
    %v393 = vmul.f32 %v377, %v384
    %v394 = vmul.f32 %v375, %v385
    %v395 = vmul.f32 %v377, %v385
    %v396 = vmul.f32 %v375, %v386
    %v397 = vmul.f32 %v377, %v386
    %v398 = vmul.f32 %v375, %v387
    %v399 = vmul.f32 %v377, %v387
    %v400 = vpack.c.bf16 %v393, %v392
    %v401 = vpack.c.bf16 %v395, %v394
    %v402 = vpack.c.bf16 %v397, %v396
    %v403 = vpack.c.bf16 %v399, %v398
    %405 = vrot.lane.b32.xlu0 %v379, 96
    %v406 = vpop.permute.xlu0 %405
    %v408 = vsel %vm234, %v400, 0
    %v411 = vsel %vm234, %v401, 0
    %v414 = vsel %vm234, %v402, 0
    %v417 = vsel %vm234, %v403, 0
    %v420 = vsel %vm234, %v406, 0
    %422 = vmatpush.bf16.xpose.msra.mxu0 0
    %423 = vmatpush.bf16.xpose.msra.mxu0 0
    %424 = vmatpush.bf16.xpose.msra.mxu0 0
    %425 = vmatpush.bf16.xpose.msra.mxu0 0
    %426 = vmatpush.bf16.xpose.msra.mxu0 0
    %427 = vmatpush.bf16.xpose.msra.mxu0 0
    %428 = vmatpush.bf16.xpose.msra.mxu0 0
    %429 = vmatpush.bf16.xpose.msra.mxu0 %v420
    %430 = vmatmul.bf16.gmra.mxu0 %v408
    %v431 = vpop.f32.mrf.mxu0
    %v432 = vadd.f32 0.0, %v431
    %v433 = vpop.f32.mrf.mxu0
    %v434 = vadd.f32 0.0, %v433
    %435 = vmatmul.bf16.gmra.mxu0 %v411
    %v436 = vpop.f32.mrf.mxu0
    %v437 = vadd.f32 0.0, %v436
    %v438 = vpop.f32.mrf.mxu0
    %v439 = vadd.f32 0.0, %v438
    %440 = vmatmul.bf16.gmra.mxu0 %v414
    %v441 = vpop.f32.mrf.mxu0
    %v442 = vadd.f32 0.0, %v441
    %v443 = vpop.f32.mrf.mxu0
    %v444 = vadd.f32 0.0, %v443
    %445 = vmatmul.bf16.gmra.mxu0 %v417
    %v446 = vpop.f32.mrf.mxu0
    %v447 = vadd.f32 0.0, %v446
    %v448 = vpop.f32.mrf.mxu0
    %v449 = vadd.f32 0.0, %v448
    %450 = vdwg.mxu0
    %vm451 = vcmp.gt.f32.partialorder %v224, 0.0
    %vm452 = vcmp.gt.f32.partialorder %v225, 0.0
    %v453 = vsel %vm451, 1, 0
    %v454 = vsel %vm452, 1, 0
    %vm455 = vcmp.eq.s32.totalorder %v453, 1
    %vm456 = vcmp.eq.s32.totalorder %v454, 1
    %v457 = vsel %vm455, %v432, -1e+09
    %v458 = vsel %vm456, %v434, -1e+09
    %v459 = vsel %vm455, %v437, -1e+09
    %v460 = vsel %vm456, %v439, -1e+09
    %v461 = vsel %vm455, %v442, -1e+09
    %v462 = vsel %vm456, %v444, -1e+09
    %v463 = vsel %vm455, %v447, -1e+09
    %v464 = vsel %vm456, %v449, -1e+09
    %vm465 = vcmask 130048
    %v466 = vsel %vm465, %v457, -inf
    %467 = vmax.xlane.f32.xlu0 %v466
    %v468 = vpop.xlane.xlu0 %467
    %v469 = vsel %vm465, %v458, -inf
    %470 = vmax.xlane.f32.xlu0 %v469
    %v471 = vpop.xlane.xlu0 %470
    %v472 = vsel %vm465, %v459, -inf
    %473 = vmax.xlane.f32.xlu0 %v472
    %v474 = vpop.xlane.xlu0 %473
    %v475 = vsel %vm465, %v460, -inf
    %476 = vmax.xlane.f32.xlu0 %v475
    %v477 = vpop.xlane.xlu0 %476
    %v478 = vsel %vm465, %v461, -inf
    %479 = vmax.xlane.f32.xlu0 %v478
    %v480 = vpop.xlane.xlu0 %479
    %v481 = vsel %vm465, %v462, -inf
    %482 = vmax.xlane.f32.xlu0 %v481
    %v483 = vpop.xlane.xlu0 %482
    %v484 = vsel %vm465, %v463, -inf
    %485 = vmax.xlane.f32.xlu0 %v484
    %v486 = vpop.xlane.xlu0 %485
    %v487 = vsel %vm465, %v464, -inf
    %488 = vmax.xlane.f32.xlu0 %v487
    %v489 = vpop.xlane.xlu0 %488
    %v490 = vsub.f32 %v457, %v468
    %v491 = vsub.f32 %v458, %v471
    %v492 = vsub.f32 %v459, %v474
    %v493 = vsub.f32 %v460, %v477
    %v494 = vsub.f32 %v461, %v480
    %v495 = vsub.f32 %v462, %v483
    %v496 = vsub.f32 %v463, %v486
    %v497 = vsub.f32 %v464, %v489
    %v498 = vmul.f32 %v490, 1.442695
    %v499 = vpow.pop %v498
    %v500 = vmul.f32 %v491, 1.442695
    %v501 = vpow.pop %v500
    %v502 = vmul.f32 %v492, 1.442695
    %v503 = vpow.pop %v502
    %v504 = vmul.f32 %v493, 1.442695
    %v505 = vpow.pop %v504
    %v506 = vmul.f32 %v494, 1.442695
    %v507 = vpow.pop %v506
    %v508 = vmul.f32 %v495, 1.442695
    %v509 = vpow.pop %v508
    %v510 = vmul.f32 %v496, 1.442695
    %v511 = vpow.pop %v510
    %v512 = vmul.f32 %v497, 1.442695
    %v513 = vpow.pop %v512
    %v514 = vsel %vm465, %v499, 0.0
    %515 = vadd.xlane.f32.xlu0 %v514
    %v516 = vpop.xlane.xlu0 %515
    %v517 = vsel %vm465, %v501, 0.0
    %518 = vadd.xlane.f32.xlu0 %v517
    %v519 = vpop.xlane.xlu0 %518
    %v520 = vsel %vm465, %v503, 0.0
    %521 = vadd.xlane.f32.xlu0 %v520
    %v522 = vpop.xlane.xlu0 %521
    %v523 = vsel %vm465, %v505, 0.0
    %524 = vadd.xlane.f32.xlu0 %v523
    %v525 = vpop.xlane.xlu0 %524
    %v526 = vsel %vm465, %v507, 0.0
    %527 = vadd.xlane.f32.xlu0 %v526
    %v528 = vpop.xlane.xlu0 %527
    %v529 = vsel %vm465, %v509, 0.0
    %530 = vadd.xlane.f32.xlu0 %v529
    %v531 = vpop.xlane.xlu0 %530
    %v532 = vsel %vm465, %v511, 0.0
    %533 = vadd.xlane.f32.xlu0 %v532
    %v534 = vpop.xlane.xlu0 %533
    %v535 = vsel %vm465, %v513, 0.0
    %536 = vadd.xlane.f32.xlu0 %v535
    %v537 = vpop.xlane.xlu0 %536
    %v538 = vrcp.pop %v516
    %v539 = vmul.f32 %v516, %v538
    %v540 = vsub.f32 1.0, %v539
    %v541 = vmul.f32 %v538, %v540
    %v542 = vadd.f32 %v538, %v541
    %vm543 = vweird.f32 %v516
    %vm544 = vweird.f32 %v538
    %vm545 = vmor %vm543, %vm544
    %v546 = vsel %vm545, %v538, %v542
    %v547 = vand.u32 2147483647, %v516
    %vm548 = vcmp.eq.f32.partialorder %v547, 8.507059e+37
    %v549 = vand.u32 %v516, 2147483648
    %v550 = vor.u32 1.1754944e-38, %v549
    %v551 = vsel %vm548, %v550, %v546
    %v552 = vmul.f32 %v499, %v551
    %v553 = vrcp.pop %v519
    %v554 = vmul.f32 %v519, %v553
    %v555 = vsub.f32 1.0, %v554
    %v556 = vmul.f32 %v553, %v555
    %v557 = vadd.f32 %v553, %v556
    %vm558 = vweird.f32 %v519
    %vm559 = vweird.f32 %v553
    %vm560 = vmor %vm558, %vm559
    %v561 = vsel %vm560, %v553, %v557
    %v562 = vand.u32 2147483647, %v519
    %vm563 = vcmp.eq.f32.partialorder %v562, 8.507059e+37
    %v564 = vand.u32 %v519, 2147483648
    %v565 = vor.u32 1.1754944e-38, %v564
    %v566 = vsel %vm563, %v565, %v561
    %v567 = vmul.f32 %v501, %v566
    %v568 = vrcp.pop %v522
    %v569 = vmul.f32 %v522, %v568
    %v570 = vsub.f32 1.0, %v569
    %v571 = vmul.f32 %v568, %v570
    %v572 = vadd.f32 %v568, %v571
    %vm573 = vweird.f32 %v522
    %vm574 = vweird.f32 %v568
    %vm575 = vmor %vm573, %vm574
    %v576 = vsel %vm575, %v568, %v572
    %v577 = vand.u32 2147483647, %v522
    %vm578 = vcmp.eq.f32.partialorder %v577, 8.507059e+37
    %v579 = vand.u32 %v522, 2147483648
    %v580 = vor.u32 1.1754944e-38, %v579
    %v581 = vsel %vm578, %v580, %v576
    %v582 = vmul.f32 %v503, %v581
    %v583 = vrcp.pop %v525
    %v584 = vmul.f32 %v525, %v583
    %v585 = vsub.f32 1.0, %v584
    %v586 = vmul.f32 %v583, %v585
    %v587 = vadd.f32 %v583, %v586
    %vm588 = vweird.f32 %v525
    %vm589 = vweird.f32 %v583
    %vm590 = vmor %vm588, %vm589
    %v591 = vsel %vm590, %v583, %v587
    %v592 = vand.u32 2147483647, %v525
    %vm593 = vcmp.eq.f32.partialorder %v592, 8.507059e+37
    %v594 = vand.u32 %v525, 2147483648
    %v595 = vor.u32 1.1754944e-38, %v594
    %v596 = vsel %vm593, %v595, %v591
    %v597 = vmul.f32 %v505, %v596
    %v598 = vrcp.pop %v528
    %v599 = vmul.f32 %v528, %v598
    %v600 = vsub.f32 1.0, %v599
    %v601 = vmul.f32 %v598, %v600
    %v602 = vadd.f32 %v598, %v601
    %vm603 = vweird.f32 %v528
    %vm604 = vweird.f32 %v598
    %vm605 = vmor %vm603, %vm604
    %v606 = vsel %vm605, %v598, %v602
    %v607 = vand.u32 2147483647, %v528
    %vm608 = vcmp.eq.f32.partialorder %v607, 8.507059e+37
    %v609 = vand.u32 %v528, 2147483648
    %v610 = vor.u32 1.1754944e-38, %v609
    %v611 = vsel %vm608, %v610, %v606
    %v612 = vmul.f32 %v507, %v611
    %v613 = vrcp.pop %v531
    %v614 = vmul.f32 %v531, %v613
    %v615 = vsub.f32 1.0, %v614
    %v616 = vmul.f32 %v613, %v615
    %v617 = vadd.f32 %v613, %v616
    %vm618 = vweird.f32 %v531
    %vm619 = vweird.f32 %v613
    %vm620 = vmor %vm618, %vm619
    %v621 = vsel %vm620, %v613, %v617
    %v622 = vand.u32 2147483647, %v531
    %vm623 = vcmp.eq.f32.partialorder %v622, 8.507059e+37
    %v624 = vand.u32 %v531, 2147483648
    %v625 = vor.u32 1.1754944e-38, %v624
    %v626 = vsel %vm623, %v625, %v621
    %v627 = vmul.f32 %v509, %v626
    %v628 = vrcp.pop %v534
    %v629 = vmul.f32 %v534, %v628
    %v630 = vsub.f32 1.0, %v629
    %v631 = vmul.f32 %v628, %v630
    %v632 = vadd.f32 %v628, %v631
    %vm633 = vweird.f32 %v534
    %vm634 = vweird.f32 %v628
    %vm635 = vmor %vm633, %vm634
    %v636 = vsel %vm635, %v628, %v632
    %v637 = vand.u32 2147483647, %v534
    %vm638 = vcmp.eq.f32.partialorder %v637, 8.507059e+37
    %v639 = vand.u32 %v534, 2147483648
    %v640 = vor.u32 1.1754944e-38, %v639
    %v641 = vsel %vm638, %v640, %v636
    %v642 = vmul.f32 %v511, %v641
    %v643 = vrcp.pop %v537
    %v644 = vmul.f32 %v537, %v643
    %v645 = vsub.f32 1.0, %v644
    %v646 = vmul.f32 %v643, %v645
    %v647 = vadd.f32 %v643, %v646
    %vm648 = vweird.f32 %v537
    %vm649 = vweird.f32 %v643
    %vm650 = vmor %vm648, %vm649
    %v651 = vsel %vm650, %v643, %v647
    %v652 = vand.u32 2147483647, %v537
    %vm653 = vcmp.eq.f32.partialorder %v652, 8.507059e+37
    %v654 = vand.u32 %v537, 2147483648
    %v655 = vor.u32 1.1754944e-38, %v654
    %v656 = vsel %vm653, %v655, %v651
    %v657 = vmul.f32 %v513, %v656
    %v658 = vpack.c.bf16 %v567, %v552
    %v659 = vpack.c.bf16 %v597, %v582
    %v660 = vpack.c.bf16 %v627, %v612
    %v661 = vpack.c.bf16 %v657, %v642
    %662 = vrot.lane.b32.xlu0 %v379, 64
    %v663 = vpop.permute.xlu0 %662
    %v666 = vsel %vm465, %v658, 0
    %v669 = vsel %vm465, %v659, 0
    %v672 = vsel %vm465, %v660, 0
    %v675 = vsel %vm465, %v661, 0
    %677 = vmatpush.bf16.msra.mxu0 0
    %678 = vmatpush.bf16.msra.mxu0 0
    %679 = vmatpush.bf16.msra.mxu0 0
    %680 = vmatpush.bf16.msra.mxu0 0
    %681 = vmatpush.bf16.msra.mxu0 0
    %682 = vmatpush.bf16.msra.mxu0 0
    %683 = vmatpush.bf16.msra.mxu0 0
    %684 = vmatpush.bf16.msra.mxu0 %v663
    %685 = vmatmul.bf16.gmra.mxu0 %v666
    %v686 = vpop.f32.mrf.mxu0
    %v687 = vadd.f32 0.0, %v686
    %v688 = vpop.f32.mrf.mxu0
    %v689 = vadd.f32 0.0, %v688
    %690 = vmatmul.bf16.gmra.mxu0 %v669
    %v691 = vpop.f32.mrf.mxu0
    %v692 = vadd.f32 0.0, %v691
    %v693 = vpop.f32.mrf.mxu0
    %v694 = vadd.f32 0.0, %v693
    %695 = vmatmul.bf16.gmra.mxu0 %v672
    %v696 = vpop.f32.mrf.mxu0
    %v697 = vadd.f32 0.0, %v696
    %v698 = vpop.f32.mrf.mxu0
    %v699 = vadd.f32 0.0, %v698
    %700 = vmatmul.bf16.gmra.mxu0 %v675
    %v701 = vpop.f32.mrf.mxu0
    %v702 = vadd.f32 0.0, %v701
    %v703 = vpop.f32.mrf.mxu0
    %v704 = vadd.f32 0.0, %v703
    %705 = vdwg.mxu0
    %v706 = vmul.f32 %v687, %v384
    %v707 = vmul.f32 %v689, %v384
    %v708 = vmul.f32 %v692, %v385
    %v709 = vmul.f32 %v694, %v385
    %v710 = vmul.f32 %v697, %v386
    %v711 = vmul.f32 %v699, %v386
    %v712 = vmul.f32 %v702, %v387
    %v713 = vmul.f32 %v704, %v387
    %v714 = vsel %vm234, %v706, 0.0
    %v715 = vsel %vm234, %v708, 0.0
    %v716 = vadd.f32 %v714, %v715
    %v717 = vsel %vm234, %v710, 0.0
    %v718 = vadd.f32 %v716, %v717
    %v719 = vsel %vm234, %v712, 0.0
    %v720 = vadd.f32 %v718, %v719
    %v721 = vsel %vm234, %v707, 0.0
    %v722 = vsel %vm234, %v709, 0.0
    %v723 = vadd.f32 %v721, %v722
    %v724 = vsel %vm234, %v711, 0.0
    %v725 = vadd.f32 %v723, %v724
    %v726 = vsel %vm234, %v713, 0.0
    %v727 = vadd.f32 %v725, %v726
    %v728 = vpack.c.bf16 %v727, %v720
    %v730 = vperm.slane %v344, 0
    %v736 = vunpack.c.l.b16 %v340
    %v737 = vunpack.c.l.b16 %v341
    %v738 = vunpack.c.l.b16 %v342
    %v739 = vunpack.c.l.b16 %v343
    %v740 = vpack.c.b16 %v737, %v736
    %v741 = vpack.c.b16 %v739, %v738
    %v745 = vsel %vm234, %v728, 0
    %747 = vmatpush.bf16.msra.mxu0 0
    %748 = vmatpush.bf16.msra.mxu0 0
    %749 = vmatpush.bf16.msra.mxu0 0
    %750 = vmatpush.bf16.msra.mxu0 0
    %751 = vmatpush.bf16.msra.mxu0 0
    %752 = vmatpush.bf16.msra.mxu0 0
    %753 = vmatpush.bf16.msra.mxu0 %v741
    %754 = vmatpush.bf16.msra.mxu0 %v740
    %755 = vmatmul.bf16.gmra.mxu0 %v745
    %v756 = vpop.f32.mrf.mxu0
    %v757 = vadd.f32 %v730, %v756
    %v758 = vpop.f32.mrf.mxu0
    %v759 = vadd.f32 %v730, %v758
    %760 = vdwg.mxu0
    %v761 = vadd.f32 %v222, %v757
    %v762 = vadd.f32 %v223, %v759
    %s763 = scalar_lea.vmem [#allocation16], 1
    %v764 = vld [vmem:[%s763] sm:$0x1]
    %s765 = scalar_lea.vmem [#allocation17], 1
    %v766 = vld [vmem:[%s765] sm:$0x1]
    %v767 = vsel %vm234, %v761, 0.0
    %768 = vadd.xlane.f32.xlu0 %v767
    %v769 = vpop.xlane.xlu0 %768
    %v770 = vsel %vm234, %v762, 0.0
    %771 = vadd.xlane.f32.xlu0 %v770
    %v772 = vpop.xlane.xlu0 %771
    %v773 = vmul.f32 %v769, %v247
    %v774 = vmul.f32 %v772, %v247
    %v775 = vsub.f32 %v761, %v773
    %v776 = vsub.f32 %v762, %v774
    %v777 = vmul.f32 %v775, %v775
    %v778 = vmul.f32 %v776, %v776
    %v779 = vsel %vm234, %v777, 0.0
    %780 = vadd.xlane.f32.xlu0 %v779
    %v781 = vpop.xlane.xlu0 %780
    %v782 = vsel %vm234, %v778, 0.0
    %783 = vadd.xlane.f32.xlu0 %v782
    %v784 = vpop.xlane.xlu0 %783
    %v785 = vmul.f32 %v781, %v266
    %v786 = vmul.f32 %v784, %v266
    %v788 = vperm.slane %v764, 0
    %v790 = vmul.f32 %v788, %v775
    %v791 = vmul.f32 %v788, %v776
    %v792 = vrsqrt.pop %v785
    %v793 = vmul.f32 %v792, %v785
    %v794 = vmul.f32 %v793, %v792
    %v795 = vmul.f32 0.5, %v794
    %v796 = vsub.f32 1.5, %v795
    %v797 = vmul.f32 %v792, %v796
    %v798 = vmul.f32 %v785, %v797
    %vm799 = vcmp.eq.f32.partialorder %v785, inf
    %v800 = vsel %vm799, %v785, %v798
    %vm801 = vcmp.eq.f32.partialorder %v785, 0.0
    %v802 = vand.u32 %v785, 2147483648
    %v803 = vsel %vm801, %v802, %v800
    %v804 = vrsqrt.pop %v786
    %v805 = vmul.f32 %v804, %v786
    %v806 = vmul.f32 %v805, %v804
    %v807 = vmul.f32 0.5, %v806
    %v808 = vsub.f32 1.5, %v807
    %v809 = vmul.f32 %v804, %v808
    %v810 = vmul.f32 %v786, %v809
    %vm811 = vcmp.eq.f32.partialorder %v786, inf
    %v812 = vsel %vm811, %v786, %v810
    %vm813 = vcmp.eq.f32.partialorder %v786, 0.0
    %v814 = vand.u32 %v786, 2147483648
    %v815 = vsel %vm813, %v814, %v812
    %v816 = vadd.f32 %v803, 1e-06
    %v817 = vadd.f32 %v815, 1e-06
    %v818 = vrcp.pop %v816
    %v819 = vmul.f32 %v816, %v818
    %v820 = vsub.f32 1.0, %v819
    %v821 = vmul.f32 %v818, %v820
    %v822 = vadd.f32 %v818, %v821
    %vm823 = vweird.f32 %v816
    %vm824 = vweird.f32 %v818
    %vm825 = vmor %vm823, %vm824
    %v826 = vsel %vm825, %v818, %v822
    %v827 = vand.u32 2147483647, %v816
    %vm828 = vcmp.eq.f32.partialorder %v827, 8.507059e+37
    %v829 = vand.u32 %v816, 2147483648
    %v830 = vor.u32 1.1754944e-38, %v829
    %v831 = vsel %vm828, %v830, %v826
    %v832 = vmul.f32 %v790, %v831
    %v833 = vrcp.pop %v817
    %v834 = vmul.f32 %v817, %v833
    %v835 = vsub.f32 1.0, %v834
    %v836 = vmul.f32 %v833, %v835
    %v837 = vadd.f32 %v833, %v836
    %vm838 = vweird.f32 %v817
    %vm839 = vweird.f32 %v833
    %vm840 = vmor %vm838, %vm839
    %v841 = vsel %vm840, %v833, %v837
    %v842 = vand.u32 2147483647, %v817
    %vm843 = vcmp.eq.f32.partialorder %v842, 8.507059e+37
    %v844 = vand.u32 %v817, 2147483648
    %v845 = vor.u32 1.1754944e-38, %v844
    %v846 = vsel %vm843, %v845, %v841
    %v847 = vmul.f32 %v791, %v846
    %v849 = vperm.slane %v766, 0
    %v851 = vadd.f32 %v832, %v849
    %v852 = vadd.f32 %v847, %v849
    %v853 = vld [vmem:[#allocation13] sm:$0xf]
    %v854 = vld [vmem:[#allocation13 + $0x4] sm:$0xf]
    %v855 = vld [vmem:[#allocation13 + $0x8] sm:$0xf]
    %v856 = vld [vmem:[#allocation13 + $0xc] sm:$0xf]
    %v857 = vld [vmem:[%s8] sm:$0x1]
    %s858 = scalar_lea.vmem [#allocation14], 16
    %v859 = vld [vmem:[%s858] sm:$0xf]
    %v860 = vld [vmem:[%s858 + $0x4] sm:$0xf]
    %v861 = vld [vmem:[%s858 + $0x8] sm:$0xf]
    %v862 = vld [vmem:[%s858 + $0xc] sm:$0xf]
    %s863 = scalar_lea.vmem %s10, 1
    %v864 = vld [vmem:[%s863] sm:$0x1]
    %s865 = scalar_lea.vmem [#allocation14], 32
    %v866 = vld [vmem:[%s865] sm:$0xf]
    %v867 = vld [vmem:[%s865 + $0x4] sm:$0xf]
    %v868 = vld [vmem:[%s865 + $0x8] sm:$0xf]
    %v869 = vld [vmem:[%s865 + $0xc] sm:$0xf]
    %s870 = scalar_lea.vmem %s10, 2
    %v871 = vld [vmem:[%s870] sm:$0x1]
    %v872 = vld [vmem:[%s13] sm:$0xf]
    %v873 = vld [vmem:[%s13 + $0x4] sm:$0xf]
    %v874 = vld [vmem:[%s13 + $0x8] sm:$0xf]
    %v875 = vld [vmem:[%s13 + $0xc] sm:$0xf]
    %v876 = vld [vmem:[#allocation19] sm:$0x3]
    %v877 = vpack.c.bf16 %v852, %v851
    %v879 = vperm.slane %v857, 0
    %v885 = vunpack.c.l.b16 %v853
    %v886 = vunpack.c.l.b16 %v854
    %v887 = vunpack.c.l.b16 %v855
    %v888 = vunpack.c.l.b16 %v856
    %v889 = vpack.c.b16 %v886, %v885
    %v890 = vpack.c.b16 %v888, %v887
    %v894 = vsel %vm234, %v877, 0
    %896 = vmatpush.bf16.msra.mxu0 0
    %897 = vmatpush.bf16.msra.mxu0 0
    %898 = vmatpush.bf16.msra.mxu0 0
    %899 = vmatpush.bf16.msra.mxu0 0
    %900 = vmatpush.bf16.msra.mxu0 0
    %901 = vmatpush.bf16.msra.mxu0 0
    %902 = vmatpush.bf16.msra.mxu0 %v890
    %903 = vmatpush.bf16.msra.mxu0 %v889
    %904 = vmatmul.bf16.gmra.mxu0 %v894
    %v905 = vpop.f32.mrf.mxu0
    %v906 = vadd.f32 %v879, %v905
    %v907 = vpop.f32.mrf.mxu0
    %v908 = vadd.f32 %v879, %v907
    %909 = vdwg.mxu0
    %v910 = vpack.c.bf16 %v227, %v226
    %v912 = vperm.slane %v864, 0
    %v918 = vunpack.c.l.b16 %v859
    %v919 = vunpack.c.l.b16 %v860
    %v920 = vunpack.c.l.b16 %v861
    %v921 = vunpack.c.l.b16 %v862
    %v922 = vpack.c.b16 %v919, %v918
    %v923 = vpack.c.b16 %v921, %v920
    %v927 = vsel %vm234, %v910, 0
    %929 = vmatpush.bf16.msra.mxu0 0
    %930 = vmatpush.bf16.msra.mxu0 0
    %931 = vmatpush.bf16.msra.mxu0 0
    %932 = vmatpush.bf16.msra.mxu0 0
    %933 = vmatpush.bf16.msra.mxu0 0
    %934 = vmatpush.bf16.msra.mxu0 0
    %935 = vmatpush.bf16.msra.mxu0 %v923
    %936 = vmatpush.bf16.msra.mxu0 %v922
    %937 = vmatmul.bf16.gmra.mxu0 %v927
    %v938 = vpop.f32.mrf.mxu0
    %v939 = vadd.f32 %v912, %v938
    %v940 = vpop.f32.mrf.mxu0
    %v941 = vadd.f32 %v912, %v940
    %942 = vdwg.mxu0
    %945 = vrot.lane.b32.xlu0 %v906, 96
    %v946 = vpop.permute.xlu0 %945
    %947 = vrot.lane.b32.xlu0 %v908, 96
    %v948 = vpop.permute.xlu0 %947
    %v951 = vmul.f32 %v906, %v946
    %v952 = vmul.f32 %v908, %v948
    %v953 = vmul.f32 %v906, %v939
    %v954 = vmul.f32 %v908, %v941
    %v955 = vpack.c.bf16 %v952, %v951
    %v956 = vpack.c.bf16 %v954, %v953
    %v961 = vunpack.c.l.b16 %v872
    %v962 = vunpack.c.l.b16 %v873
    %v963 = vunpack.c.l.b16 %v874
    %v964 = vunpack.c.l.b16 %v875
    %v965 = vpack.c.b16 %v962, %v961
    %v966 = vpack.c.b16 %v964, %v963
    %v970 = vsel %vm234, %v955, 0
    %v973 = vsel %vm234, %v956, 0
    %975 = vmatpush.bf16.msra.mxu0 0
    %976 = vmatpush.bf16.msra.mxu0 0
    %977 = vmatpush.bf16.msra.mxu0 0
    %978 = vmatpush.bf16.msra.mxu0 0
    %979 = vmatpush.bf16.msra.mxu0 0
    %980 = vmatpush.bf16.msra.mxu0 0
    %981 = vmatpush.bf16.msra.mxu0 %v966
    %982 = vmatpush.bf16.msra.mxu0 %v965
    %983 = vmatmul.bf16.gmra.mxu0 %v970
    %v984 = vpop.f32.mrf.mxu0
    %v985 = vadd.f32 0.0, %v984
    %v986 = vpop.f32.mrf.mxu0
    %v987 = vadd.f32 0.0, %v986
    %988 = vmatmul.bf16.gmra.mxu0 %v973
    %v989 = vpop.f32.mrf.mxu0
    %v990 = vadd.f32 0.0, %v989
    %v991 = vpop.f32.mrf.mxu0
    %v992 = vadd.f32 0.0, %v991
    %993 = vdwg.mxu0
    %v994 = vmax.f32 %v985, %v990
    %v995 = vmax.f32 %v987, %v992
    %v996 = vsub.f32 %v985, %v994
    %v997 = vsub.f32 %v987, %v995
    %v998 = vmul.f32 %v996, 1.442695
    %v999 = vpow.pop %v998
    %v1000 = vmul.f32 %v997, 1.442695
    %v1001 = vpow.pop %v1000
    %v1002 = vsub.f32 %v990, %v994
    %v1003 = vsub.f32 %v992, %v995
    %v1004 = vmul.f32 %v1002, 1.442695
    %v1005 = vpow.pop %v1004
    %v1006 = vmul.f32 %v1003, 1.442695
    %v1007 = vpow.pop %v1006
    %v1008 = vadd.f32 %v999, %v1005
    %v1009 = vadd.f32 %v1001, %v1007
    %v1010 = vrcp.pop %v1008
    %v1011 = vmul.f32 %v1008, %v1010
    %v1012 = vsub.f32 1.0, %v1011
    %v1013 = vmul.f32 %v1010, %v1012
    %v1014 = vadd.f32 %v1010, %v1013
    %vm1015 = vweird.f32 %v1008
    %vm1016 = vweird.f32 %v1010
    %vm1017 = vmor %vm1015, %vm1016
    %v1018 = vsel %vm1017, %v1010, %v1014
    %v1019 = vand.u32 2147483647, %v1008
    %vm1020 = vcmp.eq.f32.partialorder %v1019, 8.507059e+37
    %v1021 = vand.u32 %v1008, 2147483648
    %v1022 = vor.u32 1.1754944e-38, %v1021
    %v1023 = vsel %vm1020, %v1022, %v1018
    %v1024 = vmul.f32 1.0, %v1023
    %v1025 = vrcp.pop %v1009
    %v1026 = vmul.f32 %v1009, %v1025
    %v1027 = vsub.f32 1.0, %v1026
    %v1028 = vmul.f32 %v1025, %v1027
    %v1029 = vadd.f32 %v1025, %v1028
    %vm1030 = vweird.f32 %v1009
    %vm1031 = vweird.f32 %v1025
    %vm1032 = vmor %vm1030, %vm1031
    %v1033 = vsel %vm1032, %v1025, %v1029
    %v1034 = vand.u32 2147483647, %v1009
    %vm1035 = vcmp.eq.f32.partialorder %v1034, 8.507059e+37
    %v1036 = vand.u32 %v1009, 2147483648
    %v1037 = vor.u32 1.1754944e-38, %v1036
    %v1038 = vsel %vm1035, %v1037, %v1033
    %v1039 = vmul.f32 1.0, %v1038
    %v1040 = vmul.f32 %v999, %v1024
    %v1041 = vmul.f32 %v1001, %v1039
    %v1042 = vmul.f32 %v1005, %v1024
    %v1043 = vmul.f32 %v1007, %v1039
    %v1044 = vpack.c.bf16 %v1041, %v1040
    %v1045 = vpack.c.bf16 %v1043, %v1042
    %vm1046 = vcmask 31744
    %v1048 = vsel %vm1046, %v1044, 0
    %v1051 = vsel %vm1046, %v1045, 0
    %vm1053 = vcmask 1041408
    %v1055 = vsel %vm1053, %v876, 0
    %1057 = vmatpush.bf16.msra.mxu0 0
    %1058 = vmatpush.bf16.msra.mxu0 0
    %1059 = vmatpush.bf16.msra.mxu0 0
    %1060 = vmatpush.bf16.msra.mxu0 0
    %1061 = vmatpush.bf16.msra.mxu0 0
    %1062 = vmatpush.bf16.msra.mxu0 0
    %1063 = vmatpush.bf16.msra.mxu0 0
    %1064 = vmatpush.bf16.msra.mxu0 %v1055
    %1065 = vmatmul.bf16.gmra.mxu0 %v1048
    %v1066 = vpop.f32.mrf.mxu0
    %v1067 = vadd.f32 0.0, %v1066
    %v1068 = vpop.f32.mrf.mxu0
    %v1069 = vadd.f32 0.0, %v1068
    %1070 = vmatmul.bf16.gmra.mxu0 %v1051
    %v1071 = vpop.f32.mrf.mxu0
    %v1072 = vadd.f32 0.0, %v1071
    %v1073 = vpop.f32.mrf.mxu0
    %v1074 = vadd.f32 0.0, %v1073
    %1075 = vdwg.mxu0
    %v1076 = vmul.f32 %v1067, %v946
    %v1077 = vmul.f32 %v1069, %v948
    %v1078 = vmul.f32 %v1072, %v939
    %v1079 = vmul.f32 %v1074, %v941
    %v1080 = vadd.f32 %v1076, %v1078
    %v1081 = vadd.f32 %v1077, %v1079
    %v1082 = vpack.c.bf16 %v1081, %v1080
    %v1084 = vperm.slane %v871, 0
    %v1090 = vunpack.c.l.b16 %v866
    %v1091 = vunpack.c.l.b16 %v867
    %v1092 = vunpack.c.l.b16 %v868
    %v1093 = vunpack.c.l.b16 %v869
    %v1094 = vpack.c.b16 %v1091, %v1090
    %v1095 = vpack.c.b16 %v1093, %v1092
    %v1099 = vsel %vm234, %v1082, 0
    %1101 = vmatpush.bf16.msra.mxu0 0
    %1102 = vmatpush.bf16.msra.mxu0 0
    %1103 = vmatpush.bf16.msra.mxu0 0
    %1104 = vmatpush.bf16.msra.mxu0 0
    %1105 = vmatpush.bf16.msra.mxu0 0
    %1106 = vmatpush.bf16.msra.mxu0 0
    %1107 = vmatpush.bf16.msra.mxu0 %v1095
    %1108 = vmatpush.bf16.msra.mxu0 %v1094
    %1109 = vmatmul.bf16.gmra.mxu0 %v1099
    %v1110 = vpop.f32.mrf.mxu0
    %v1111 = vadd.f32 %v1084, %v1110
    %v1112 = vpop.f32.mrf.mxu0
    %v1113 = vadd.f32 %v1084, %v1112
    %1114 = vdwg.mxu0
    %v1115 = vadd.f32 %v761, %v1111
    %v1116 = vadd.f32 %v762, %v1113
    %s1117 = scalar_lea.vmem [#allocation16], 2
    %v1118 = vld [vmem:[%s1117] sm:$0x1]
    %s1119 = scalar_lea.vmem [#allocation17], 2
    %v1120 = vld [vmem:[%s1119] sm:$0x1]
    %v1121 = vsel %vm234, %v1115, 0.0
    %1122 = vadd.xlane.f32.xlu0 %v1121
    %v1123 = vpop.xlane.xlu0 %1122
    %v1124 = vsel %vm234, %v1116, 0.0
    %1125 = vadd.xlane.f32.xlu0 %v1124
    %v1126 = vpop.xlane.xlu0 %1125
    %v1127 = vmul.f32 %v1123, %v247
    %v1128 = vmul.f32 %v1126, %v247
    %v1129 = vsub.f32 %v1115, %v1127
    %v1130 = vsub.f32 %v1116, %v1128
    %v1131 = vmul.f32 %v1129, %v1129
    %v1132 = vmul.f32 %v1130, %v1130
    %v1133 = vsel %vm234, %v1131, 0.0
    %1134 = vadd.xlane.f32.xlu0 %v1133
    %v1135 = vpop.xlane.xlu0 %1134
    %v1136 = vsel %vm234, %v1132, 0.0
    %1137 = vadd.xlane.f32.xlu0 %v1136
    %v1138 = vpop.xlane.xlu0 %1137
    %v1139 = vmul.f32 %v1135, %v266
    %v1140 = vmul.f32 %v1138, %v266
    %v1142 = vperm.slane %v1118, 0
    %v1144 = vmul.f32 %v1142, %v1129
    %v1145 = vmul.f32 %v1142, %v1130
    %v1146 = vrsqrt.pop %v1139
    %v1147 = vmul.f32 %v1146, %v1139
    %v1148 = vmul.f32 %v1147, %v1146
    %v1149 = vmul.f32 0.5, %v1148
    %v1150 = vsub.f32 1.5, %v1149
    %v1151 = vmul.f32 %v1146, %v1150
    %v1152 = vmul.f32 %v1139, %v1151
    %vm1153 = vcmp.eq.f32.partialorder %v1139, inf
    %v1154 = vsel %vm1153, %v1139, %v1152
    %vm1155 = vcmp.eq.f32.partialorder %v1139, 0.0
    %v1156 = vand.u32 %v1139, 2147483648
    %v1157 = vsel %vm1155, %v1156, %v1154
    %v1158 = vrsqrt.pop %v1140
    %v1159 = vmul.f32 %v1158, %v1140
    %v1160 = vmul.f32 %v1159, %v1158
    %v1161 = vmul.f32 0.5, %v1160
    %v1162 = vsub.f32 1.5, %v1161
    %v1163 = vmul.f32 %v1158, %v1162
    %v1164 = vmul.f32 %v1140, %v1163
    %vm1165 = vcmp.eq.f32.partialorder %v1140, inf
    %v1166 = vsel %vm1165, %v1140, %v1164
    %vm1167 = vcmp.eq.f32.partialorder %v1140, 0.0
    %v1168 = vand.u32 %v1140, 2147483648
    %v1169 = vsel %vm1167, %v1168, %v1166
    %v1170 = vadd.f32 %v1157, 1e-06
    %v1171 = vadd.f32 %v1169, 1e-06
    %v1172 = vrcp.pop %v1170
    %v1173 = vmul.f32 %v1170, %v1172
    %v1174 = vsub.f32 1.0, %v1173
    %v1175 = vmul.f32 %v1172, %v1174
    %v1176 = vadd.f32 %v1172, %v1175
    %vm1177 = vweird.f32 %v1170
    %vm1178 = vweird.f32 %v1172
    %vm1179 = vmor %vm1177, %vm1178
    %v1180 = vsel %vm1179, %v1172, %v1176
    %v1181 = vand.u32 2147483647, %v1170
    %vm1182 = vcmp.eq.f32.partialorder %v1181, 8.507059e+37
    %v1183 = vand.u32 %v1170, 2147483648
    %v1184 = vor.u32 1.1754944e-38, %v1183
    %v1185 = vsel %vm1182, %v1184, %v1180
    %v1186 = vmul.f32 %v1144, %v1185
    %v1187 = vrcp.pop %v1171
    %v1188 = vmul.f32 %v1171, %v1187
    %v1189 = vsub.f32 1.0, %v1188
    %v1190 = vmul.f32 %v1187, %v1189
    %v1191 = vadd.f32 %v1187, %v1190
    %vm1192 = vweird.f32 %v1171
    %vm1193 = vweird.f32 %v1187
    %vm1194 = vmor %vm1192, %vm1193
    %v1195 = vsel %vm1194, %v1187, %v1191
    %v1196 = vand.u32 2147483647, %v1171
    %vm1197 = vcmp.eq.f32.partialorder %v1196, 8.507059e+37
    %v1198 = vand.u32 %v1171, 2147483648
    %v1199 = vor.u32 1.1754944e-38, %v1198
    %v1200 = vsel %vm1197, %v1199, %v1195
    %v1201 = vmul.f32 %v1145, %v1200
    %v1203 = vperm.slane %v1120, 0
    %v1205 = vadd.f32 %v1186, %v1203
    %v1206 = vadd.f32 %v1201, %v1203
    %s1207 = scalar_lea.vmem [#allocation13], 16
    %v1208 = vld [vmem:[%s1207] sm:$0xf]
    %v1209 = vld [vmem:[%s1207 + $0x4] sm:$0xf]
    %v1210 = vld [vmem:[%s1207 + $0x8] sm:$0xf]
    %v1211 = vld [vmem:[%s1207 + $0xc] sm:$0xf]
    %s1212 = scalar_lea.vmem %s8, 1
    %v1213 = vld [vmem:[%s1212] sm:$0x1]
    %s1214 = scalar_lea.vmem [#allocation14], 48
    %v1215 = vld [vmem:[%s1214] sm:$0xf]
    %v1216 = vld [vmem:[%s1214 + $0x4] sm:$0xf]
    %v1217 = vld [vmem:[%s1214 + $0x8] sm:$0xf]
    %v1218 = vld [vmem:[%s1214 + $0xc] sm:$0xf]
    %s1219 = scalar_lea.vmem %s10, 3
    %v1220 = vld [vmem:[%s1219] sm:$0x1]
    %s1221 = scalar_lea.vmem [#allocation14], 64
    %v1222 = vld [vmem:[%s1221] sm:$0xf]
    %v1223 = vld [vmem:[%s1221 + $0x4] sm:$0xf]
    %v1224 = vld [vmem:[%s1221 + $0x8] sm:$0xf]
    %v1225 = vld [vmem:[%s1221 + $0xc] sm:$0xf]
    %s1226 = scalar_lea.vmem %s10, 4
    %v1227 = vld [vmem:[%s1226] sm:$0x1]
    %v1228 = vpack.c.bf16 %v1206, %v1205
    %v1230 = vperm.slane %v1213, 0
    %v1236 = vunpack.c.l.b16 %v1208
    %v1237 = vunpack.c.l.b16 %v1209
    %v1238 = vunpack.c.l.b16 %v1210
    %v1239 = vunpack.c.l.b16 %v1211
    %v1240 = vpack.c.b16 %v1237, %v1236
    %v1241 = vpack.c.b16 %v1239, %v1238
    %v1245 = vsel %vm234, %v1228, 0
    %1247 = vmatpush.bf16.msra.mxu0 0
    %1248 = vmatpush.bf16.msra.mxu0 0
    %1249 = vmatpush.bf16.msra.mxu0 0
    %1250 = vmatpush.bf16.msra.mxu0 0
    %1251 = vmatpush.bf16.msra.mxu0 0
    %1252 = vmatpush.bf16.msra.mxu0 0
    %1253 = vmatpush.bf16.msra.mxu0 %v1241
    %1254 = vmatpush.bf16.msra.mxu0 %v1240
    %1255 = vmatmul.bf16.gmra.mxu0 %v1245
    %v1256 = vpop.f32.mrf.mxu0
    %v1257 = vadd.f32 %v1230, %v1256
    %v1258 = vpop.f32.mrf.mxu0
    %v1259 = vadd.f32 %v1230, %v1258
    %1260 = vdwg.mxu0
    %v1261 = vpack.c.bf16 %v229, %v228
    %v1263 = vperm.slane %v1220, 0
    %v1269 = vunpack.c.l.b16 %v1215
    %v1270 = vunpack.c.l.b16 %v1216
    %v1271 = vunpack.c.l.b16 %v1217
    %v1272 = vunpack.c.l.b16 %v1218
    %v1273 = vpack.c.b16 %v1270, %v1269
    %v1274 = vpack.c.b16 %v1272, %v1271
    %v1278 = vsel %vm234, %v1261, 0
    %1280 = vmatpush.bf16.msra.mxu0 0
    %1281 = vmatpush.bf16.msra.mxu0 0
    %1282 = vmatpush.bf16.msra.mxu0 0
    %1283 = vmatpush.bf16.msra.mxu0 0
    %1284 = vmatpush.bf16.msra.mxu0 0
    %1285 = vmatpush.bf16.msra.mxu0 0
    %1286 = vmatpush.bf16.msra.mxu0 %v1274
    %1287 = vmatpush.bf16.msra.mxu0 %v1273
    %1288 = vmatmul.bf16.gmra.mxu0 %v1278
    %v1289 = vpop.f32.mrf.mxu0
    %v1290 = vadd.f32 %v1263, %v1289
    %v1291 = vpop.f32.mrf.mxu0
    %v1292 = vadd.f32 %v1263, %v1291
    %1293 = vdwg.mxu0
    %1296 = vrot.lane.b32.xlu0 %v1257, 96
    %v1297 = vpop.permute.xlu0 %1296
    %1298 = vrot.lane.b32.xlu0 %v1259, 96
    %v1299 = vpop.permute.xlu0 %1298
    %v1302 = vmul.f32 %v1257, %v1297
    %v1303 = vmul.f32 %v1259, %v1299
    %v1304 = vmul.f32 %v1257, %v1290
    %v1305 = vmul.f32 %v1259, %v1292
    %v1306 = vpack.c.bf16 %v1303, %v1302
    %v1307 = vpack.c.bf16 %v1305, %v1304
    %v1309 = vsel %vm234, %v1306, 0
    %v1312 = vsel %vm234, %v1307, 0
    %1314 = vmatpush.bf16.msra.mxu0 0
    %1315 = vmatpush.bf16.msra.mxu0 0
    %1316 = vmatpush.bf16.msra.mxu0 0
    %1317 = vmatpush.bf16.msra.mxu0 0
    %1318 = vmatpush.bf16.msra.mxu0 0
    %1319 = vmatpush.bf16.msra.mxu0 0
    %1320 = vmatpush.bf16.msra.mxu0 %v966
    %1321 = vmatpush.bf16.msra.mxu0 %v965
    %1322 = vmatmul.bf16.gmra.mxu0 %v1309
    %v1323 = vpop.f32.mrf.mxu0
    %v1324 = vadd.f32 0.0, %v1323
    %v1325 = vpop.f32.mrf.mxu0
    %v1326 = vadd.f32 0.0, %v1325
    %1327 = vmatmul.bf16.gmra.mxu0 %v1312
    %v1328 = vpop.f32.mrf.mxu0
    %v1329 = vadd.f32 0.0, %v1328
    %v1330 = vpop.f32.mrf.mxu0
    %v1331 = vadd.f32 0.0, %v1330
    %1332 = vdwg.mxu0
    %v1333 = vmax.f32 %v1324, %v1329
    %v1334 = vmax.f32 %v1326, %v1331
    %v1335 = vsub.f32 %v1324, %v1333
    %v1336 = vsub.f32 %v1326, %v1334
    %v1337 = vmul.f32 %v1335, 1.442695
    %v1338 = vpow.pop %v1337
    %v1339 = vmul.f32 %v1336, 1.442695
    %v1340 = vpow.pop %v1339
    %v1341 = vsub.f32 %v1329, %v1333
    %v1342 = vsub.f32 %v1331, %v1334
    %v1343 = vmul.f32 %v1341, 1.442695
    %v1344 = vpow.pop %v1343
    %v1345 = vmul.f32 %v1342, 1.442695
    %v1346 = vpow.pop %v1345
    %v1347 = vadd.f32 %v1338, %v1344
    %v1348 = vadd.f32 %v1340, %v1346
    %v1349 = vrcp.pop %v1347
    %v1350 = vmul.f32 %v1347, %v1349
    %v1351 = vsub.f32 1.0, %v1350
    %v1352 = vmul.f32 %v1349, %v1351
    %v1353 = vadd.f32 %v1349, %v1352
    %vm1354 = vweird.f32 %v1347
    %vm1355 = vweird.f32 %v1349
    %vm1356 = vmor %vm1354, %vm1355
    %v1357 = vsel %vm1356, %v1349, %v1353
    %v1358 = vand.u32 2147483647, %v1347
    %vm1359 = vcmp.eq.f32.partialorder %v1358, 8.507059e+37
    %v1360 = vand.u32 %v1347, 2147483648
    %v1361 = vor.u32 1.1754944e-38, %v1360
    %v1362 = vsel %vm1359, %v1361, %v1357
    %v1363 = vmul.f32 1.0, %v1362
    %v1364 = vrcp.pop %v1348
    %v1365 = vmul.f32 %v1348, %v1364
    %v1366 = vsub.f32 1.0, %v1365
    %v1367 = vmul.f32 %v1364, %v1366
    %v1368 = vadd.f32 %v1364, %v1367
    %vm1369 = vweird.f32 %v1348
    %vm1370 = vweird.f32 %v1364
    %vm1371 = vmor %vm1369, %vm1370
    %v1372 = vsel %vm1371, %v1364, %v1368
    %v1373 = vand.u32 2147483647, %v1348
    %vm1374 = vcmp.eq.f32.partialorder %v1373, 8.507059e+37
    %v1375 = vand.u32 %v1348, 2147483648
    %v1376 = vor.u32 1.1754944e-38, %v1375
    %v1377 = vsel %vm1374, %v1376, %v1372
    %v1378 = vmul.f32 1.0, %v1377
    %v1379 = vmul.f32 %v1338, %v1363
    %v1380 = vmul.f32 %v1340, %v1378
    %v1381 = vmul.f32 %v1344, %v1363
    %v1382 = vmul.f32 %v1346, %v1378
    %v1383 = vpack.c.bf16 %v1380, %v1379
    %v1384 = vpack.c.bf16 %v1382, %v1381
    %v1386 = vsel %vm1046, %v1383, 0
    %v1389 = vsel %vm1046, %v1384, 0
    %1391 = vmatpush.bf16.msra.mxu0 0
    %1392 = vmatpush.bf16.msra.mxu0 0
    %1393 = vmatpush.bf16.msra.mxu0 0
    %1394 = vmatpush.bf16.msra.mxu0 0
    %1395 = vmatpush.bf16.msra.mxu0 0
    %1396 = vmatpush.bf16.msra.mxu0 0
    %1397 = vmatpush.bf16.msra.mxu0 0
    %1398 = vmatpush.bf16.msra.mxu0 %v1055
    %1399 = vmatmul.bf16.gmra.mxu0 %v1386
    %v1400 = vpop.f32.mrf.mxu0
    %v1401 = vadd.f32 0.0, %v1400
    %v1402 = vpop.f32.mrf.mxu0
    %v1403 = vadd.f32 0.0, %v1402
    %1404 = vmatmul.bf16.gmra.mxu0 %v1389
    %v1405 = vpop.f32.mrf.mxu0
    %v1406 = vadd.f32 0.0, %v1405
    %v1407 = vpop.f32.mrf.mxu0
    %v1408 = vadd.f32 0.0, %v1407
    %1409 = vdwg.mxu0
    %v1410 = vmul.f32 %v1401, %v1297
    %v1411 = vmul.f32 %v1403, %v1299
    %v1412 = vmul.f32 %v1406, %v1290
    %v1413 = vmul.f32 %v1408, %v1292
    %v1414 = vadd.f32 %v1410, %v1412
    %v1415 = vadd.f32 %v1411, %v1413
    %v1416 = vpack.c.bf16 %v1415, %v1414
    %v1418 = vperm.slane %v1227, 0
    %v1424 = vunpack.c.l.b16 %v1222
    %v1425 = vunpack.c.l.b16 %v1223
    %v1426 = vunpack.c.l.b16 %v1224
    %v1427 = vunpack.c.l.b16 %v1225
    %v1428 = vpack.c.b16 %v1425, %v1424
    %v1429 = vpack.c.b16 %v1427, %v1426
    %v1433 = vsel %vm234, %v1416, 0
    %1435 = vmatpush.bf16.msra.mxu0 0
    %1436 = vmatpush.bf16.msra.mxu0 0
    %1437 = vmatpush.bf16.msra.mxu0 0
    %1438 = vmatpush.bf16.msra.mxu0 0
    %1439 = vmatpush.bf16.msra.mxu0 0
    %1440 = vmatpush.bf16.msra.mxu0 0
    %1441 = vmatpush.bf16.msra.mxu0 %v1429
    %1442 = vmatpush.bf16.msra.mxu0 %v1428
    %1443 = vmatmul.bf16.gmra.mxu0 %v1433
    %v1444 = vpop.f32.mrf.mxu0
    %v1445 = vadd.f32 %v1418, %v1444
    %v1446 = vpop.f32.mrf.mxu0
    %v1447 = vadd.f32 %v1418, %v1446
    %1448 = vdwg.mxu0
    %v1449 = vadd.f32 %v1115, %v1445
    %v1450 = vadd.f32 %v1116, %v1447
    %s1451 = scalar_lea.vmem [#allocation16], 3
    %v1452 = vld [vmem:[%s1451] sm:$0x1]
    %s1453 = scalar_lea.vmem [#allocation17], 3
    %v1454 = vld [vmem:[%s1453] sm:$0x1]
    %v1455 = vsel %vm234, %v1449, 0.0
    %1456 = vadd.xlane.f32.xlu0 %v1455
    %v1457 = vpop.xlane.xlu0 %1456
    %v1458 = vsel %vm234, %v1450, 0.0
    %1459 = vadd.xlane.f32.xlu0 %v1458
    %v1460 = vpop.xlane.xlu0 %1459
    %v1461 = vmul.f32 %v1457, %v247
    %v1462 = vmul.f32 %v1460, %v247
    %v1463 = vsub.f32 %v1449, %v1461
    %v1464 = vsub.f32 %v1450, %v1462
    %v1465 = vmul.f32 %v1463, %v1463
    %v1466 = vmul.f32 %v1464, %v1464
    %v1467 = vsel %vm234, %v1465, 0.0
    %1468 = vadd.xlane.f32.xlu0 %v1467
    %v1469 = vpop.xlane.xlu0 %1468
    %v1470 = vsel %vm234, %v1466, 0.0
    %1471 = vadd.xlane.f32.xlu0 %v1470
    %v1472 = vpop.xlane.xlu0 %1471
    %v1473 = vmul.f32 %v1469, %v266
    %v1474 = vmul.f32 %v1472, %v266
    %v1476 = vperm.slane %v1452, 0
    %v1478 = vmul.f32 %v1476, %v1463
    %v1479 = vmul.f32 %v1476, %v1464
    %v1480 = vrsqrt.pop %v1473
    %v1481 = vmul.f32 %v1480, %v1473
    %v1482 = vmul.f32 %v1481, %v1480
    %v1483 = vmul.f32 0.5, %v1482
    %v1484 = vsub.f32 1.5, %v1483
    %v1485 = vmul.f32 %v1480, %v1484
    %v1486 = vmul.f32 %v1473, %v1485
    %vm1487 = vcmp.eq.f32.partialorder %v1473, inf
    %v1488 = vsel %vm1487, %v1473, %v1486
    %vm1489 = vcmp.eq.f32.partialorder %v1473, 0.0
    %v1490 = vand.u32 %v1473, 2147483648
    %v1491 = vsel %vm1489, %v1490, %v1488
    %v1492 = vrsqrt.pop %v1474
    %v1493 = vmul.f32 %v1492, %v1474
    %v1494 = vmul.f32 %v1493, %v1492
    %v1495 = vmul.f32 0.5, %v1494
    %v1496 = vsub.f32 1.5, %v1495
    %v1497 = vmul.f32 %v1492, %v1496
    %v1498 = vmul.f32 %v1474, %v1497
    %vm1499 = vcmp.eq.f32.partialorder %v1474, inf
    %v1500 = vsel %vm1499, %v1474, %v1498
    %vm1501 = vcmp.eq.f32.partialorder %v1474, 0.0
    %v1502 = vand.u32 %v1474, 2147483648
    %v1503 = vsel %vm1501, %v1502, %v1500
    %v1504 = vadd.f32 %v1491, 1e-06
    %v1505 = vadd.f32 %v1503, 1e-06
    %v1506 = vrcp.pop %v1504
    %v1507 = vmul.f32 %v1504, %v1506
    %v1508 = vsub.f32 1.0, %v1507
    %v1509 = vmul.f32 %v1506, %v1508
    %v1510 = vadd.f32 %v1506, %v1509
    %vm1511 = vweird.f32 %v1504
    %vm1512 = vweird.f32 %v1506
    %vm1513 = vmor %vm1511, %vm1512
    %v1514 = vsel %vm1513, %v1506, %v1510
    %v1515 = vand.u32 2147483647, %v1504
    %vm1516 = vcmp.eq.f32.partialorder %v1515, 8.507059e+37
    %v1517 = vand.u32 %v1504, 2147483648
    %v1518 = vor.u32 1.1754944e-38, %v1517
    %v1519 = vsel %vm1516, %v1518, %v1514
    %v1520 = vmul.f32 %v1478, %v1519
    %v1521 = vrcp.pop %v1505
    %v1522 = vmul.f32 %v1505, %v1521
    %v1523 = vsub.f32 1.0, %v1522
    %v1524 = vmul.f32 %v1521, %v1523
    %v1525 = vadd.f32 %v1521, %v1524
    %vm1526 = vweird.f32 %v1505
    %vm1527 = vweird.f32 %v1521
    %vm1528 = vmor %vm1526, %vm1527
    %v1529 = vsel %vm1528, %v1521, %v1525
    %v1530 = vand.u32 2147483647, %v1505
    %vm1531 = vcmp.eq.f32.partialorder %v1530, 8.507059e+37
    %v1532 = vand.u32 %v1505, 2147483648
    %v1533 = vor.u32 1.1754944e-38, %v1532
    %v1534 = vsel %vm1531, %v1533, %v1529
    %v1535 = vmul.f32 %v1479, %v1534
    %v1537 = vperm.slane %v1454, 0
    %v1539 = vadd.f32 %v1520, %v1537
    %v1540 = vadd.f32 %v1535, %v1537
    %s1541 = scalar_lea.vmem [#allocation14], 80
    %v1542 = vld [vmem:[%s1541] sm:$0xf]
    %v1543 = vld [vmem:[%s1541 + $0x4] sm:$0xf]
    %v1544 = vld [vmem:[%s1541 + $0x8] sm:$0xf]
    %v1545 = vld [vmem:[%s1541 + $0xc] sm:$0xf]
    %s1546 = scalar_lea.vmem %s10, 5
    %v1547 = vld [vmem:[%s1546] sm:$0x1]
    %s1548 = scalar_lea.vmem [#allocation14], 96
    %v1549 = vld [vmem:[%s1548] sm:$0xf]
    %v1550 = vld [vmem:[%s1548 + $0x4] sm:$0xf]
    %v1551 = vld [vmem:[%s1548 + $0x8] sm:$0xf]
    %v1552 = vld [vmem:[%s1548 + $0xc] sm:$0xf]
    %s1553 = scalar_lea.vmem %s10, 6
    %v1554 = vld [vmem:[%s1553] sm:$0x1]
    %v1555 = vpack.c.bf16 %v1540, %v1539
    %v1558 = vunpack.c.l.b16 %v230
    %v1559 = vunpack.c.l.b16 %v231
    %v1560 = vpack.c.b16 %v1559, %v1558
    %v1562 = vsel %vm465, %v1560, 0
    %1564 = vmatpush.bf16.msra.mxu0 0
    %1565 = vmatpush.bf16.msra.mxu0 0
    %1566 = vmatpush.bf16.msra.mxu0 0
    %1567 = vmatpush.bf16.msra.mxu0 0
    %1568 = vmatpush.bf16.msra.mxu0 0
    %1569 = vmatpush.bf16.msra.mxu0 0
    %1570 = vmatpush.bf16.msra.mxu0 0
    %1571 = vmatpush.bf16.msra.mxu0 %v1555
    %1572 = vmatmul.bf16.gmra.mxu0 %v1562
    %v1573 = vpop.f32.mrf.mxu0
    %v1574 = vadd.f32 0.0, %v1573
    %v1575 = vpop.f32.mrf.mxu0
    %v1576 = vadd.f32 0.0, %v1575
    %1577 = vdwg.mxu0
    %v1578 = vpack.c.bf16 %v1576, %v1574
    %v1580 = vperm.slane %v1547, 0
    %v1586 = vunpack.c.l.b16 %v1542
    %v1587 = vunpack.c.l.b16 %v1543
    %v1588 = vunpack.c.l.b16 %v1544
    %v1589 = vunpack.c.l.b16 %v1545
    %v1590 = vpack.c.b16 %v1587, %v1586
    %v1591 = vpack.c.b16 %v1589, %v1588
    %v1595 = vsel %vm234, %v1578, 0
    %1597 = vmatpush.bf16.msra.mxu0 0
    %1598 = vmatpush.bf16.msra.mxu0 0
    %1599 = vmatpush.bf16.msra.mxu0 0
    %1600 = vmatpush.bf16.msra.mxu0 0
    %1601 = vmatpush.bf16.msra.mxu0 0
    %1602 = vmatpush.bf16.msra.mxu0 0
    %1603 = vmatpush.bf16.msra.mxu0 %v1591
    %1604 = vmatpush.bf16.msra.mxu0 %v1590
    %1605 = vmatmul.bf16.gmra.mxu0 %v1595
    %v1606 = vpop.f32.mrf.mxu0
    %v1607 = vadd.f32 %v1580, %v1606
    %v1608 = vpop.f32.mrf.mxu0
    %v1609 = vadd.f32 %v1580, %v1608
    %1610 = vdwg.mxu0
    %v1611 = vmul.f32 %v1607, 0.5
    %v1612 = vmul.f32 %v1609, 0.5
    %v1613 = vmul.f32 %v1607, 0.044715
    %v1614 = vmul.f32 %v1609, 0.044715
    %v1615 = vmul.f32 %v1613, %v1607
    %v1616 = vmul.f32 %v1614, %v1609
    %v1617 = vmul.f32 %v1615, %v1607
    %v1618 = vmul.f32 %v1616, %v1609
    %v1619 = vadd.f32 %v1607, %v1617
    %v1620 = vadd.f32 %v1609, %v1618
    %v1621 = vmul.f32 %v1619, 0.7978846
    %v1622 = vmul.f32 %v1620, 0.7978846
    %v1623 = vtanh.pop %v1621
    %v1624 = vtanh.pop %v1622
    %v1625 = vadd.f32 %v1623, 1.0
    %v1626 = vadd.f32 %v1624, 1.0
    %v1627 = vmul.f32 %v1611, %v1625
    %v1628 = vmul.f32 %v1612, %v1626
    %v1629 = vpack.c.bf16 %v1628, %v1627
    %1630 = vmatpush.bf16.msra.mxu0 0
    %1631 = vmatpush.bf16.msra.mxu0 0
    %1632 = vmatpush.bf16.msra.mxu0 0
    %1633 = vmatpush.bf16.msra.mxu0 0
    %1634 = vmatpush.bf16.msra.mxu0 0
    %1635 = vmatpush.bf16.msra.mxu0 0
    %1636 = vmatpush.bf16.msra.mxu0 0
    %1637 = vmatpush.bf16.msra.mxu0 %v1629
    %1638 = vmatmul.bf16.gmra.mxu0 %v1562
    %v1639 = vpop.f32.mrf.mxu0
    %v1640 = vadd.f32 0.0, %v1639
    %v1641 = vpop.f32.mrf.mxu0
    %v1642 = vadd.f32 0.0, %v1641
    %1643 = vdwg.mxu0
    %v1644 = vpack.c.bf16 %v1642, %v1640
    %v1646 = vperm.slane %v1554, 0
    %v1652 = vunpack.c.l.b16 %v1549
    %v1653 = vunpack.c.l.b16 %v1550
    %v1654 = vunpack.c.l.b16 %v1551
    %v1655 = vunpack.c.l.b16 %v1552
    %v1656 = vpack.c.b16 %v1653, %v1652
    %v1657 = vpack.c.b16 %v1655, %v1654
    %v1661 = vsel %vm234, %v1644, 0
    %1663 = vmatpush.bf16.msra.mxu0 0
    %1664 = vmatpush.bf16.msra.mxu0 0
    %1665 = vmatpush.bf16.msra.mxu0 0
    %1666 = vmatpush.bf16.msra.mxu0 0
    %1667 = vmatpush.bf16.msra.mxu0 0
    %1668 = vmatpush.bf16.msra.mxu0 0
    %1669 = vmatpush.bf16.msra.mxu0 %v1657
    %1670 = vmatpush.bf16.msra.mxu0 %v1656
    %1671 = vmatmul.bf16.gmra.mxu0 %v1661
    %v1672 = vpop.f32.mrf.mxu0
    %v1673 = vadd.f32 %v1646, %v1672
    %v1674 = vpop.f32.mrf.mxu0
    %v1675 = vadd.f32 %v1646, %v1674
    %1676 = vdwg.mxu0
    %v1677 = vadd.f32 %v1449, %v1673
    %v1678 = vadd.f32 %v1450, %v1675
    %1679 = vst.msk [vmem:[#allocation20] sm:$0xff] %vm234, %v1677
    %1680 = vst.msk [vmem:[#allocation20 + $0x8] sm:$0xff] %vm234, %v1678
    // Predicated region
    $region110: #{tpu_custom_call.1} parent=1 // pred_check
      _
    $region111: #{tpu_custom_call.1} parent=1 // pred_check_branch
      %1682 = sbr.rel (0) target = $region113
    $region112: #{tpu_custom_call.1} parent=1 // pred_region
      %1684 = vsyncadd [#allocation4], 0
      %s1685 = sshll.u32 [#allocation20], 4
      %s1686 = int_to_ptr.vmem [resolvable:$true] %s1685
      %s1687 = sshll.u32 %s16, 4
      %s1688 = int_to_ptr.hbm [resolvable:$true] %s1687
      %1693 = dma.vmem_to_hbm [thread:$0]  %s1686, 256, %s1688, [#allocation4], 128, 128, 8
    $region113: #{tpu_custom_call.1} parent=1 // pred_fallthru
      _
    // Predicated region
    $region114: #{tpu_custom_call.1} parent=1 // pred_check
      _
    $region115: #{tpu_custom_call.1} parent=1 // pred_check_branch
      %1695 = sbr.rel (0) target = $region117
    $region116: #{tpu_custom_call.1} parent=1 // pred_region
      %1697 = dma.done [#allocation4], 256
    $region117: #{tpu_custom_call.1} parent=1 // pred_fallthru
      _
    %1698 = vsyncpa [#allocation3], 1
    %1699 = vsyncpa [#allocation6], 1
    %1700 = vsyncpa [#allocation9], 1
    %1701 = vsyncpa [#allocation12], 1
    %1702 = vsyncpa [#allocation15], 1
    %1703 = vsyncpa [#allocation18], 1
    %1704 = vsyncpa [#allocation4], 1

</llo_original>
